<compile_context>
chip_gen: v6e
topology: v6e:2x2x1
jax: 0.10.0
libtpu: 0.0.40
codegen_flags: <defaults>
</compile_context>

<pallas_src>
import functools

import jax
import jax.numpy as jnp
from jax import lax
from jax.experimental import pallas as pl
from jax.experimental.pallas import tpu as pltpu

EPS = 1e-5                         # PyTorch BatchNorm2d default eps
_VMEM_LIMIT = 64 * 1024 * 1024     # explicit cap; v7x physical VMEM is 64 MiB


def _compiler_params():
    return pltpu.CompilerParams(
        dimension_semantics=("parallel",),   # M tiles are independent
        vmem_limit_bytes=_VMEM_LIMIT,
    )


def _pick_tile(m, target):
    """Largest M-tile <= target that divides m and is a multiple of 8 sublanes."""
    if m <= target:
        return m
    t0 = target - (target % 8)
    for t in range(t0, 7, -8):
        if m % t == 0:
            return t
    # TODO(synk): pad ragged M up to a multiple of 8 instead of one big block.
    return m


# ---------------- Pallas kernels ----------------

def _matmul_stats_kernel(x_ref, w_ref, y_ref, ps_ref):
    # y = x @ w on the MXU (bf16 operands, f32 accumulate).  Also emit this
    # tile's partial BatchNorm statistics (column sum, sum of squares) in f32.
    acc = jnp.dot(x_ref[...], w_ref[...], preferred_element_type=jnp.float32)
    y_ref[...] = acc
    s = jnp.sum(acc, axis=0, keepdims=True)
    ss = jnp.sum(acc * acc, axis=0, keepdims=True)
    ps_ref[...] = jnp.concatenate([s, ss], axis=0)[None]


def _bn_relu_apply_kernel(y_ref, scale_ref, shift_ref, o_ref):
    # Pass-2 BN apply + ReLU (f32 epilogue, cast to compute dtype on store).
    h = jnp.maximum(y_ref[...] * scale_ref[...] + shift_ref[...], 0.0)
    o_ref[...] = h.astype(o_ref.dtype)


def _bn_relu_matmul_stats_kernel(y_ref, scale_ref, shift_ref, w_ref, o_ref, ps_ref):
    # Fused: previous stage's BN-apply + ReLU (f32), then this stage's matmul
    # (bf16 operands, f32 accumulate) + partial stats.
    h = jnp.maximum(y_ref[...] * scale_ref[...] + shift_ref[...], 0.0)
    acc = jnp.dot(h.astype(w_ref.dtype), w_ref[...],
                  preferred_element_type=jnp.float32)
    o_ref[...] = acc
    s = jnp.sum(acc, axis=0, keepdims=True)
    ss = jnp.sum(acc * acc, axis=0, keepdims=True)
    ps_ref[...] = jnp.concatenate([s, ss], axis=0)[None]


def _residual_out_kernel(y_ref, s_ref, b_ref, r_ref, rs_ref, rb_ref, o_ref):
    # Fused epilogue: BN3-apply + shortcut-BN-apply + residual add + ReLU (f32).
    main = y_ref[...] * s_ref[...] + b_ref[...]
    res = r_ref[...] * rs_ref[...] + rb_ref[...]
    o_ref[...] = jnp.maximum(main + res, 0.0).astype(o_ref.dtype)


# ---------------- kernel wrappers (gridded over M) ----------------

def matmul_stats(x, w, *, block_m):
    M, K = x.shape
    N = w.shape[1]
    tm = _pick_tile(M, block_m)
    g = M // tm
    return pl.pallas_call(
        _matmul_stats_kernel,
        grid=(g,),
        in_specs=[
            pl.BlockSpec((tm, K), lambda i: (i, 0)),
            pl.BlockSpec((K, N), lambda i: (0, 0)),     # weights stay resident
        ],
        out_specs=(
            pl.BlockSpec((tm, N), lambda i: (i, 0)),
            pl.BlockSpec((1, 2, N), lambda i: (i, 0, 0)),
        ),
        out_shape=(
            jax.ShapeDtypeStruct((M, N), jnp.float32),   # pre-BN activations
            jax.ShapeDtypeStruct((g, 2, N), jnp.float32),  # per-tile (sum, sumsq)
        ),
        compiler_params=_compiler_params(),
    )(x, w)


def bn_relu_apply(y, scale, shift, out_dtype, *, block_m):
    M, C = y.shape
    tm = _pick_tile(M, block_m)
    g = M // tm
    return pl.pallas_call(
        _bn_relu_apply_kernel,
        grid=(g,),
        in_specs=[
            pl.BlockSpec((tm, C), lambda i: (i, 0)),
            pl.BlockSpec((1, C), lambda i: (0, 0)),
            pl.BlockSpec((1, C), lambda i: (0, 0)),
        ],
        out_specs=pl.BlockSpec((tm, C), lambda i: (i, 0)),
        out_shape=jax.ShapeDtypeStruct((M, C), out_dtype),
        compiler_params=_compiler_params(),
    )(y, scale, shift)


def bn_relu_matmul_stats(y, scale, shift, w, *, block_m):
    M, C = y.shape
    N = w.shape[1]
    tm = _pick_tile(M, block_m)
    g = M // tm
    return pl.pallas_call(
        _bn_relu_matmul_stats_kernel,
        grid=(g,),
        in_specs=[
            pl.BlockSpec((tm, C), lambda i: (i, 0)),
            pl.BlockSpec((1, C), lambda i: (0, 0)),
            pl.BlockSpec((1, C), lambda i: (0, 0)),
            pl.BlockSpec((C, N), lambda i: (0, 0)),
        ],
        out_specs=(
            pl.BlockSpec((tm, N), lambda i: (i, 0)),
            pl.BlockSpec((1, 2, N), lambda i: (i, 0, 0)),
        ),
        out_shape=(
            jax.ShapeDtypeStruct((M, N), jnp.float32),
            jax.ShapeDtypeStruct((g, 2, N), jnp.float32),
        ),
        compiler_params=_compiler_params(),
    )(y, scale, shift, w)


def residual_out(y, s, b, r, rs, rb, *, block_m):
    M, C = y.shape
    tm = _pick_tile(M, block_m)
    g = M // tm
    return pl.pallas_call(
        _residual_out_kernel,
        grid=(g,),
        in_specs=[
            pl.BlockSpec((tm, C), lambda i: (i, 0)),
            pl.BlockSpec((1, C), lambda i: (0, 0)),
            pl.BlockSpec((1, C), lambda i: (0, 0)),
            pl.BlockSpec((tm, C), lambda i: (i, 0)),
            pl.BlockSpec((1, C), lambda i: (0, 0)),
            pl.BlockSpec((1, C), lambda i: (0, 0)),
        ],
        out_specs=pl.BlockSpec((tm, C), lambda i: (i, 0)),
        out_shape=jax.ShapeDtypeStruct((M, C), jnp.float32),
        compiler_params=_compiler_params(),
    )(y, s, b, r, rs, rb)


def _bn_scale_shift(pstats, count, gamma, beta):
    # Per-channel BN finalization from the per-tile partial sums.  O(C) work,
    # left as (XLA) glue: mu = sum/M, var = sumsq/M - mu^2 (biased, matches
    # nn.BatchNorm2d forward in train mode), all in f32.
    s = jnp.sum(pstats[:, 0, :], axis=0)
    ss = jnp.sum(pstats[:, 1, :], axis=0)
    mu = s / count
    var = jnp.maximum(ss / count - mu * mu, 0.0)
    scale = gamma.astype(jnp.float32) * lax.rsqrt(var + EPS)
    shift = beta.astype(jnp.float32) - mu * scale
    return scale.reshape(1, -1), shift.reshape(1, -1)


# ---------------- module forward (Pallas) ----------------

def bottleneck_forward(x_nchw, p, stride, *, compute_dtype=jnp.bfloat16,
                       block_m=512):
    N, Cin, H, W = x_nchw.shape
    Cm = p['w1'].shape[1]
    Cout = p['w3'].shape[1]
    s = stride
    Ho = (H + 2 - 3) // s + 1
    Wo = (W + 2 - 3) // s + 1
    M1 = N * H * W
    M2 = N * Ho * Wo

    # NCHW -> NHWC so channels sit on lanes (layout glue).
    x = jnp.transpose(x_nchw, (0, 2, 3, 1)).astype(jnp.float32)
    x2d = x.reshape(M1, Cin)
    xc = x2d.astype(compute_dtype)

    # conv1 (1x1): matmul + partial BN1 stats; finalize; apply BN1 + ReLU.
    y1, ps1 = matmul_stats(xc, p['w1'].astype(compute_dtype), block_m=block_m)
    sc1, sh1 = _bn_scale_shift(ps1, M1, p['g1'], p['b1'])
    h1 = bn_relu_apply(y1, sc1, sh1, compute_dtype, block_m=block_m)  # (M1, Cm)

    # conv2 (3x3, stride, pad=1): lay the 9 taps out along channels so the
    # kernel contracts one deep-K matmul (K = 9*Cm) instead of 9 shallow ones.
    h1p = jnp.pad(h1.reshape(N, H, W, Cm), ((0, 0), (1, 1), (1, 1), (0, 0)))
    taps = []
    for dy in range(3):
        for dx in range(3):
            t = h1p[:, dy:dy + s * (Ho - 1) + 1:s, dx:dx + s * (Wo - 1) + 1:s, :]
            taps.append(t.reshape(M2, Cm))
    taps = jnp.concatenate(taps, axis=1)                    # (M2, 9*Cm), glue
    w2 = p['w2_hwio'].reshape(9 * Cm, Cm).astype(compute_dtype)
    y2, ps2 = matmul_stats(taps, w2, block_m=block_m)
    sc2, sh2 = _bn_scale_shift(ps2, M2, p['g2'], p['b2'])

    # Shortcut: projection (1x1 strided conv + BN stats) or identity.
    if s != 1 or Cin != Cout:
        xs = x[:, ::s, ::s, :].reshape(M2, Cin).astype(compute_dtype)
        res, pss = matmul_stats(xs, p['ws'].astype(compute_dtype), block_m=block_m)
        scs, shs = _bn_scale_shift(pss, M2, p['gs'], p['bs'])
    else:
        res = x2d                                           # identity (f32)
        scs = jnp.ones((1, Cout), jnp.float32)
        shs = jnp.zeros((1, Cout), jnp.float32)

    # conv3 (1x1): fused BN2-apply + ReLU + matmul + partial BN3 stats.
    y3, ps3 = bn_relu_matmul_stats(y2, sc2, sh2, p['w3'].astype(compute_dtype),
                                   block_m=block_m)
    sc3, sh3 = _bn_scale_shift(ps3, M2, p['g3'], p['b3'])

    # Fused epilogue: BN3-apply + shortcut-BN-apply + add + ReLU.
    out2d = residual_out(y3, sc3, sh3, res, scs, shs, block_m=block_m)
    out = out2d.reshape(N, Ho, Wo, Cout)
    return jnp.transpose(out, (0, 3, 1, 2))                 # back to NCHW


# ---------------- deterministic parameter init ----------------

def init_params(key, Cin, Cout, stride):
    Cm = Cout // 4
    ks = jax.random.split(key, 12)

    def bn_par(kg, kb, C):
        g = 1.0 + 0.1 * jax.random.normal(kg, (C,), jnp.float32)
        b = 0.1 * jax.random.normal(kb, (C,), jnp.float32)
        return g, b

    p = {
        'w1': 0.2 * jax.random.normal(ks[0], (Cin, Cm), jnp.float32),
        'w2_hwio': 0.2 * jax.random.normal(ks[1], (3, 3, Cm, Cm), jnp.float32),
        'w3': 0.2 * jax.random.normal(ks[2], (Cm, Cout), jnp.float32),
    }
    p['g1'], p['b1'] = bn_par(ks[3], ks[4], Cm)
    p['g2'], p['b2'] = bn_par(ks[5], ks[6], Cm)
    p['g3'], p['b3'] = bn_par(ks[7], ks[8], Cout)
    if stride != 1 or Cin != Cout:
        p['ws'] = 0.2 * jax.random.normal(ks[9], (Cin, Cout), jnp.float32)
        p['gs'], p['bs'] = bn_par(ks[10], ks[11], Cout)
    return p


# ---------------- pure-JAX reference (for correctness check) ----------------

def reference_forward(x_nchw, p, stride, matmul_dtype=jnp.float32):
    # matmul_dtype lets us check the bf16-operand MXU path against a reference
    # that quantizes its conv operands at the same points (f32 accumulation).
    x = jnp.transpose(x_nchw, (0, 2, 3, 1)).astype(jnp.float32)
    dn = ('NHWC', 'HWIO', 'NHWC')

    def conv(h, w, strides, padding):
        return lax.conv_general_dilated(
            h.astype(matmul_dtype), w.astype(matmul_dtype), strides, padding,
            dimension_numbers=dn, preferred_element_type=jnp.float32)

    def bn(y, gamma, beta):
        g = gamma.reshape(1, 1, 1, -1)
        b = beta.reshape(1, 1, 1, -1)
        mu = jnp.mean(y, axis=(0, 1, 2), keepdims=True)
        var = jnp.mean((y - mu) ** 2, axis=(0, 1, 2), keepdims=True)
        return (y - mu) * lax.rsqrt(var + EPS) * g + b

    Cin = x.shape[-1]
    Cm = p['w1'].shape[1]
    Cout = p['w3'].shape[1]
    h = conv(x, p['w1'].reshape(1, 1, Cin, Cm), (1, 1), 'VALID')
    h = jnp.maximum(bn(h, p['g1'], p['b1']), 0.0)
    h = conv(h, p['w2_hwio'], (stride, stride), ((1, 1), (1, 1)))
    h = jnp.maximum(bn(h, p['g2'], p['b2']), 0.0)
    h = conv(h, p['w3'].reshape(1, 1, Cm, Cout), (1, 1), 'VALID')
    h = bn(h, p['g3'], p['b3'])
    if stride != 1 or Cin != Cout:
        sc = conv(x, p['ws'].reshape(1, 1, Cin, Cout), (stride, stride), 'VALID')
        sc = bn(sc, p['gs'], p['bs'])
    else:
        sc = x
    out = jnp.maximum(h + sc, 0.0)
    return jnp.transpose(out, (0, 3, 1, 2))


if __name__ == "__main__":
    key = jax.random.PRNGKey(0)
    kx, kp = jax.random.split(key)

    fwd = jax.jit(bottleneck_forward,
                  static_argnames=("stride", "compute_dtype", "block_m"))

    configs = [
        # (inchannel, outchannel, stride, input NCHW shape)
        (4, 16, 2, (2, 4, 16, 16)),   # projection shortcut path
        (16, 16, 1, (2, 16, 8, 8)),   # identity shortcut path
    ]
    for i, (cin, cout, stride, shape) in enumerate(configs):
        x = jax.random.normal(jax.random.fold_in(kx, i), shape, jnp.float32)
        params = init_params(jax.random.fold_in(kp, i), cin, cout, stride)

        # block_m=128 forces a multi-tile grid (M1=512 -> 4 tiles) so the
        # two-pass (tiled) BatchNorm path is actually exercised at toy shapes.

        # 1) f32 compute mode: tight check of kernel logic vs. the f32 reference.
        out32 = jax.block_until_ready(
            fwd(x, params, stride=stride, compute_dtype=jnp.float32, block_m=128))
        ref32 = jax.block_until_ready(reference_forward(x, params, stride))
        assert out32.shape == ref32.shape, (out32.shape, ref32.shape)
        err32 = float(jnp.max(jnp.abs(out32 - ref32)))
        assert err32 < 1e-3, f"config {i}: f32 max abs err {err32}"

        # 2) bf16 MXU mode (production default): compare against a reference
        #    that also feeds bf16 conv operands.  Looser tolerance: the two
        #    pipelines can round to different bf16 ulps at the cast points.
        outbf = jax.block_until_ready(
            fwd(x, params, stride=stride, compute_dtype=jnp.bfloat16, block_m=128))
        refbf = jax.block_until_ready(
            reference_forward(x, params, stride, matmul_dtype=jnp.bfloat16))
        errbf = float(jnp.max(jnp.abs(outbf - refbf)))
        assert errbf < 1e-2, f"config {i}: bf16 max abs err {errbf}"

    print("KERNEL_OK")
</pallas_src>

<mosaic_0001>
module attributes {stable_mosaic.version = 11 : i64} {
  func.func @_matmul_stats_kernel(%arg0: i32, %arg1: memref<128x4xf32, #tpu.memory_space<vmem>>, %arg2: memref<4x4xf32, #tpu.memory_space<vmem>>, %arg3: memref<128x4xf32, #tpu.memory_space<vmem>>, %arg4: memref<1x2x4xf32, #tpu.memory_space<vmem>>) attributes {dimension_semantics = [#tpu.dimension_semantics<parallel>], iteration_bounds = array<i64: 4>, scalar_prefetch = 0 : i64, scratch_operands = 0 : i64, tpu.core_type = #tpu.core_type<tc>, window_params = [{transform_indices = @transform_0, window_bounds = array<i64: 128, 4>}, {pipeline_mode = #tpu.pipeline_mode<synchronous>, transform_indices = @transform_1, window_bounds = array<i64: 4, 4>}, {transform_indices = @transform_2, window_bounds = array<i64: 128, 4>}, {transform_indices = @transform_3, window_bounds = array<i64: 1, 2, 4>}]} {
    %c0 = arith.constant 0 : index
    %c0_0 = arith.constant 0 : index
    %0 = vector.load %arg1[%c0, %c0_0] : memref<128x4xf32, #tpu.memory_space<vmem>>, vector<128x4xf32>
    %c0_1 = arith.constant 0 : index
    %c0_2 = arith.constant 0 : index
    %1 = vector.load %arg2[%c0_1, %c0_2] : memref<4x4xf32, #tpu.memory_space<vmem>>, vector<4x4xf32>
    %cst = arith.constant dense<0.000000e+00> : vector<128x4xf32>
    %2 = tpu.matmul %0, %1, %cst {dimension_numbers = #tpu.dot_dimension_numbers<[1], [0], [0], [1], [0, 0, 1, 1], [], []>} : vector<128x4xf32>, vector<4x4xf32>, vector<128x4xf32> -> vector<128x4xf32>
    %c0_3 = arith.constant 0 : index
    %c0_4 = arith.constant 0 : index
    %3 = vector.load %arg3[%c0_3, %c0_4] : memref<128x4xf32, #tpu.memory_space<vmem>>, vector<128x4xf32>
    tpu.vector_store %arg3[%c0_3, %c0_4], %2 {strides = array<i32>} : memref<128x4xf32, #tpu.memory_space<vmem>>, vector<128x4xf32>,
    %cst_5 = arith.constant dense<0.000000e+00> : vector<4xf32>
    %4 = vector.multi_reduction <add>, %2, %cst_5 [0] : vector<128x4xf32> to vector<4xf32>
    %5 = vector.shape_cast %4 : vector<4xf32> to vector<1x4xf32>
    %6 = arith.mulf %2, %2 : vector<128x4xf32>
    %cst_6 = arith.constant dense<0.000000e+00> : vector<4xf32>
    %7 = vector.multi_reduction <add>, %6, %cst_6 [0] : vector<128x4xf32> to vector<4xf32>
    %8 = vector.shape_cast %7 : vector<4xf32> to vector<1x4xf32>
    %9 = tpu.concatenate %5, %8 in 0 : vector<1x4xf32>, vector<1x4xf32> -> vector<2x4xf32>
    %10 = vector.shape_cast %9 : vector<2x4xf32> to vector<1x2x4xf32>
    %c0_7 = arith.constant 0 : index
    %c0_8 = arith.constant 0 : index
    %c0_9 = arith.constant 0 : index
    %11 = vector.load %arg4[%c0_7, %c0_8, %c0_9] : memref<1x2x4xf32, #tpu.memory_space<vmem>>, vector<1x2x4xf32>
    tpu.vector_store %arg4[%c0_7, %c0_8, %c0_9], %10 {strides = array<i32>} : memref<1x2x4xf32, #tpu.memory_space<vmem>>, vector<1x2x4xf32>,
    return
  }
  func.func @transform_0(%arg0: i32) -> (i32, i32) {
    %c0_i32 = arith.constant 0 : i32
    %c0_i32_0 = arith.constant 0 : i32
    return %arg0, %c0_i32 : i32, i32
  }
  func.func @transform_1(%arg0: i32) -> (i32, i32) {
    %c0_i32 = arith.constant 0 : i32
    %c0_i32_0 = arith.constant 0 : i32
    %c0_i32_1 = arith.constant 0 : i32
    return %c0_i32, %c0_i32_0 : i32, i32
  }
  func.func @transform_2(%arg0: i32) -> (i32, i32) {
    %c0_i32 = arith.constant 0 : i32
    %c0_i32_0 = arith.constant 0 : i32
    return %arg0, %c0_i32 : i32, i32
  }
  func.func @transform_3(%arg0: i32) -> (i32, i32, i32) {
    %c0_i32 = arith.constant 0 : i32
    %c0_i32_0 = arith.constant 0 : i32
    %c0_i32_1 = arith.constant 0 : i32
    return %arg0, %c0_i32, %c0_i32_0 : i32, i32, i32
  }
}

module attributes {stable_mosaic.version = 11 : i64} {
  func.func @_bn_relu_apply_kernel(%arg0: i32, %arg1: memref<128x4xf32, #tpu.memory_space<vmem>>, %arg2: memref<1x4xf32, #tpu.memory_space<vmem>>, %arg3: memref<1x4xf32, #tpu.memory_space<vmem>>, %arg4: memref<128x4xf32, #tpu.memory_space<vmem>>) attributes {dimension_semantics = [#tpu.dimension_semantics<parallel>], iteration_bounds = array<i64: 4>, scalar_prefetch = 0 : i64, scratch_operands = 0 : i64, tpu.core_type = #tpu.core_type<tc>, window_params = [{transform_indices = @transform_0, window_bounds = array<i64: 128, 4>}, {pipeline_mode = #tpu.pipeline_mode<synchronous>, transform_indices = @transform_1, window_bounds = array<i64: 1, 4>}, {pipeline_mode = #tpu.pipeline_mode<synchronous>, transform_indices = @transform_2, window_bounds = array<i64: 1, 4>}, {transform_indices = @transform_3, window_bounds = array<i64: 128, 4>}]} {
    %c0 = arith.constant 0 : index
    %c0_0 = arith.constant 0 : index
    %0 = vector.load %arg1[%c0, %c0_0] : memref<128x4xf32, #tpu.memory_space<vmem>>, vector<128x4xf32>
    %c0_1 = arith.constant 0 : index
    %c0_2 = arith.constant 0 : index
    %1 = vector.load %arg2[%c0_1, %c0_2] : memref<1x4xf32, #tpu.memory_space<vmem>>, vector<1x4xf32>
    %2 = vector.broadcast %1 : vector<1x4xf32> to vector<128x4xf32>
    %3 = arith.mulf %0, %2 : vector<128x4xf32>
    %c0_3 = arith.constant 0 : index
    %c0_4 = arith.constant 0 : index
    %4 = vector.load %arg3[%c0_3, %c0_4] : memref<1x4xf32, #tpu.memory_space<vmem>>, vector<1x4xf32>
    %5 = vector.broadcast %4 : vector<1x4xf32> to vector<128x4xf32>
    %6 = arith.addf %3, %5 : vector<128x4xf32>
    %cst = arith.constant 0.000000e+00 : f32
    %7 = vector.broadcast %cst : f32 to vector<128x4xf32>
    %8 = arith.maximumf %6, %7 : vector<128x4xf32>
    %c0_5 = arith.constant 0 : index
    %c0_6 = arith.constant 0 : index
    %9 = vector.load %arg4[%c0_5, %c0_6] : memref<128x4xf32, #tpu.memory_space<vmem>>, vector<128x4xf32>
    tpu.vector_store %arg4[%c0_5, %c0_6], %8 {strides = array<i32>} : memref<128x4xf32, #tpu.memory_space<vmem>>, vector<128x4xf32>,
    return
  }
  func.func @transform_0(%arg0: i32) -> (i32, i32) {
    %c0_i32 = arith.constant 0 : i32
    %c0_i32_0 = arith.constant 0 : i32
    return %arg0, %c0_i32 : i32, i32
  }
  func.func @transform_1(%arg0: i32) -> (i32, i32) {
    %c0_i32 = arith.constant 0 : i32
    %c0_i32_0 = arith.constant 0 : i32
    %c0_i32_1 = arith.constant 0 : i32
    return %c0_i32, %c0_i32_0 : i32, i32
  }
  func.func @transform_2(%arg0: i32) -> (i32, i32) {
    %c0_i32 = arith.constant 0 : i32
    %c0_i32_0 = arith.constant 0 : i32
    %c0_i32_1 = arith.constant 0 : i32
    return %c0_i32, %c0_i32_0 : i32, i32
  }
  func.func @transform_3(%arg0: i32) -> (i32, i32) {
    %c0_i32 = arith.constant 0 : i32
    %c0_i32_0 = arith.constant 0 : i32
    return %arg0, %c0_i32 : i32, i32
  }
}

module attributes {stable_mosaic.version = 11 : i64} {
  func.func @_bn_relu_matmul_stats_kernel(%arg0: i32, %arg1: memref<128x4xf32, #tpu.memory_space<vmem>>, %arg2: memref<1x4xf32, #tpu.memory_space<vmem>>, %arg3: memref<1x4xf32, #tpu.memory_space<vmem>>, %arg4: memref<4x16xf32, #tpu.memory_space<vmem>>, %arg5: memref<128x16xf32, #tpu.memory_space<vmem>>, %arg6: memref<1x2x16xf32, #tpu.memory_space<vmem>>) attributes {dimension_semantics = [#tpu.dimension_semantics<parallel>], iteration_bounds = array<i64: 1>, scalar_prefetch = 0 : i64, scratch_operands = 0 : i64, tpu.core_type = #tpu.core_type<tc>, window_params = [{transform_indices = @transform_0, window_bounds = array<i64: 128, 4>}, {pipeline_mode = #tpu.pipeline_mode<synchronous>, transform_indices = @transform_1, window_bounds = array<i64: 1, 4>}, {pipeline_mode = #tpu.pipeline_mode<synchronous>, transform_indices = @transform_2, window_bounds = array<i64: 1, 4>}, {pipeline_mode = #tpu.pipeline_mode<synchronous>, transform_indices = @transform_3, window_bounds = array<i64: 4, 16>}, {transform_indices = @transform_4, window_bounds = array<i64: 128, 16>}, {transform_indices = @transform_5, window_bounds = array<i64: 1, 2, 16>}]} {
    %c0 = arith.constant 0 : index
    %c0_0 = arith.constant 0 : index
    %0 = vector.load %arg1[%c0, %c0_0] : memref<128x4xf32, #tpu.memory_space<vmem>>, vector<128x4xf32>
    %c0_1 = arith.constant 0 : index
    %c0_2 = arith.constant 0 : index
    %1 = vector.load %arg2[%c0_1, %c0_2] : memref<1x4xf32, #tpu.memory_space<vmem>>, vector<1x4xf32>
    %2 = vector.broadcast %1 : vector<1x4xf32> to vector<128x4xf32>
    %3 = arith.mulf %0, %2 : vector<128x4xf32>
    %c0_3 = arith.constant 0 : index
    %c0_4 = arith.constant 0 : index
    %4 = vector.load %arg3[%c0_3, %c0_4] : memref<1x4xf32, #tpu.memory_space<vmem>>, vector<1x4xf32>
    %5 = vector.broadcast %4 : vector<1x4xf32> to vector<128x4xf32>
    %6 = arith.addf %3, %5 : vector<128x4xf32>
    %cst = arith.constant 0.000000e+00 : f32
    %7 = vector.broadcast %cst : f32 to vector<128x4xf32>
    %8 = arith.maximumf %6, %7 : vector<128x4xf32>
    %c0_5 = arith.constant 0 : index
    %c0_6 = arith.constant 0 : index
    %9 = vector.load %arg4[%c0_5, %c0_6] : memref<4x16xf32, #tpu.memory_space<vmem>>, vector<4x16xf32>
    %cst_7 = arith.constant dense<0.000000e+00> : vector<128x16xf32>
    %10 = tpu.matmul %8, %9, %cst_7 {dimension_numbers = #tpu.dot_dimension_numbers<[1], [0], [0], [1], [0, 0, 1, 1], [], []>} : vector<128x4xf32>, vector<4x16xf32>, vector<128x16xf32> -> vector<128x16xf32>
    %c0_8 = arith.constant 0 : index
    %c0_9 = arith.constant 0 : index
    %11 = vector.load %arg5[%c0_8, %c0_9] : memref<128x16xf32, #tpu.memory_space<vmem>>, vector<128x16xf32>
    tpu.vector_store %arg5[%c0_8, %c0_9], %10 {strides = array<i32>} : memref<128x16xf32, #tpu.memory_space<vmem>>, vector<128x16xf32>,
    %cst_10 = arith.constant dense<0.000000e+00> : vector<16xf32>
    %12 = vector.multi_reduction <add>, %10, %cst_10 [0] : vector<128x16xf32> to vector<16xf32>
    %13 = vector.shape_cast %12 : vector<16xf32> to vector<1x16xf32>
    %14 = arith.mulf %10, %10 : vector<128x16xf32>
    %cst_11 = arith.constant dense<0.000000e+00> : vector<16xf32>
    %15 = vector.multi_reduction <add>, %14, %cst_11 [0] : vector<128x16xf32> to vector<16xf32>
    %16 = vector.shape_cast %15 : vector<16xf32> to vector<1x16xf32>
    %17 = tpu.concatenate %13, %16 in 0 : vector<1x16xf32>, vector<1x16xf32> -> vector<2x16xf32>
    %18 = vector.shape_cast %17 : vector<2x16xf32> to vector<1x2x16xf32>
    %c0_12 = arith.constant 0 : index
    %c0_13 = arith.constant 0 : index
    %c0_14 = arith.constant 0 : index
    %19 = vector.load %arg6[%c0_12, %c0_13, %c0_14] : memref<1x2x16xf32, #tpu.memory_space<vmem>>, vector<1x2x16xf32>
    tpu.vector_store %arg6[%c0_12, %c0_13, %c0_14], %18 {strides = array<i32>} : memref<1x2x16xf32, #tpu.memory_space<vmem>>, vector<1x2x16xf32>,
    return
  }
  func.func @transform_0(%arg0: i32) -> (i32, i32) {
    %c0_i32 = arith.constant 0 : i32
    %c0_i32_0 = arith.constant 0 : i32
    return %arg0, %c0_i32 : i32, i32
  }
  func.func @transform_1(%arg0: i32) -> (i32, i32) {
    %c0_i32 = arith.constant 0 : i32
    %c0_i32_0 = arith.constant 0 : i32
    %c0_i32_1 = arith.constant 0 : i32
    return %c0_i32, %c0_i32_0 : i32, i32
  }
  func.func @transform_2(%arg0: i32) -> (i32, i32) {
    %c0_i32 = arith.constant 0 : i32
    %c0_i32_0 = arith.constant 0 : i32
    %c0_i32_1 = arith.constant 0 : i32
    return %c0_i32, %c0_i32_0 : i32, i32
  }
  func.func @transform_3(%arg0: i32) -> (i32, i32) {
    %c0_i32 = arith.constant 0 : i32
    %c0_i32_0 = arith.constant 0 : i32
    %c0_i32_1 = arith.constant 0 : i32
    return %c0_i32, %c0_i32_0 : i32, i32
  }
  func.func @transform_4(%arg0: i32) -> (i32, i32) {
    %c0_i32 = arith.constant 0 : i32
    %c0_i32_0 = arith.constant 0 : i32
    return %arg0, %c0_i32 : i32, i32
  }
  func.func @transform_5(%arg0: i32) -> (i32, i32, i32) {
    %c0_i32 = arith.constant 0 : i32
    %c0_i32_0 = arith.constant 0 : i32
    %c0_i32_1 = arith.constant 0 : i32
    return %arg0, %c0_i32, %c0_i32_0 : i32, i32, i32
  }
}

module attributes {stable_mosaic.version = 11 : i64} {
  func.func @_matmul_stats_kernel(%arg0: i32, %arg1: memref<128x36xf32, #tpu.memory_space<vmem>>, %arg2: memref<36x4xf32, #tpu.memory_space<vmem>>, %arg3: memref<128x4xf32, #tpu.memory_space<vmem>>, %arg4: memref<1x2x4xf32, #tpu.memory_space<vmem>>) attributes {dimension_semantics = [#tpu.dimension_semantics<parallel>], iteration_bounds = array<i64: 1>, scalar_prefetch = 0 : i64, scratch_operands = 0 : i64, tpu.core_type = #tpu.core_type<tc>, window_params = [{transform_indices = @transform_0, window_bounds = array<i64: 128, 36>}, {pipeline_mode = #tpu.pipeline_mode<synchronous>, transform_indices = @transform_1, window_bounds = array<i64: 36, 4>}, {transform_indices = @transform_2, window_bounds = array<i64: 128, 4>}, {transform_indices = @transform_3, window_bounds = array<i64: 1, 2, 4>}]} {
    %c0 = arith.constant 0 : index
    %c0_0 = arith.constant 0 : index
    %0 = vector.load %arg1[%c0, %c0_0] : memref<128x36xf32, #tpu.memory_space<vmem>>, vector<128x36xf32>
    %c0_1 = arith.constant 0 : index
    %c0_2 = arith.constant 0 : index
    %1 = vector.load %arg2[%c0_1, %c0_2] : memref<36x4xf32, #tpu.memory_space<vmem>>, vector<36x4xf32>
    %cst = arith.constant dense<0.000000e+00> : vector<128x4xf32>
    %2 = tpu.matmul %0, %1, %cst {dimension_numbers = #tpu.dot_dimension_numbers<[1], [0], [0], [1], [0, 0, 1, 1], [], []>} : vector<128x36xf32>, vector<36x4xf32>, vector<128x4xf32> -> vector<128x4xf32>
    %c0_3 = arith.constant 0 : index
    %c0_4 = arith.constant 0 : index
    %3 = vector.load %arg3[%c0_3, %c0_4] : memref<128x4xf32, #tpu.memory_space<vmem>>, vector<128x4xf32>
    tpu.vector_store %arg3[%c0_3, %c0_4], %2 {strides = array<i32>} : memref<128x4xf32, #tpu.memory_space<vmem>>, vector<128x4xf32>,
    %cst_5 = arith.constant dense<0.000000e+00> : vector<4xf32>
    %4 = vector.multi_reduction <add>, %2, %cst_5 [0] : vector<128x4xf32> to vector<4xf32>
    %5 = vector.shape_cast %4 : vector<4xf32> to vector<1x4xf32>
    %6 = arith.mulf %2, %2 : vector<128x4xf32>
    %cst_6 = arith.constant dense<0.000000e+00> : vector<4xf32>
    %7 = vector.multi_reduction <add>, %6, %cst_6 [0] : vector<128x4xf32> to vector<4xf32>
    %8 = vector.shape_cast %7 : vector<4xf32> to vector<1x4xf32>
    %9 = tpu.concatenate %5, %8 in 0 : vector<1x4xf32>, vector<1x4xf32> -> vector<2x4xf32>
    %10 = vector.shape_cast %9 : vector<2x4xf32> to vector<1x2x4xf32>
    %c0_7 = arith.constant 0 : index
    %c0_8 = arith.constant 0 : index
    %c0_9 = arith.constant 0 : index
    %11 = vector.load %arg4[%c0_7, %c0_8, %c0_9] : memref<1x2x4xf32, #tpu.memory_space<vmem>>, vector<1x2x4xf32>
    tpu.vector_store %arg4[%c0_7, %c0_8, %c0_9], %10 {strides = array<i32>} : memref<1x2x4xf32, #tpu.memory_space<vmem>>, vector<1x2x4xf32>,
    return
  }
  func.func @transform_0(%arg0: i32) -> (i32, i32) {
    %c0_i32 = arith.constant 0 : i32
    %c0_i32_0 = arith.constant 0 : i32
    return %arg0, %c0_i32 : i32, i32
  }
  func.func @transform_1(%arg0: i32) -> (i32, i32) {
    %c0_i32 = arith.constant 0 : i32
    %c0_i32_0 = arith.constant 0 : i32
    %c0_i32_1 = arith.constant 0 : i32
    return %c0_i32, %c0_i32_0 : i32, i32
  }
  func.func @transform_2(%arg0: i32) -> (i32, i32) {
    %c0_i32 = arith.constant 0 : i32
    %c0_i32_0 = arith.constant 0 : i32
    return %arg0, %c0_i32 : i32, i32
  }
  func.func @transform_3(%arg0: i32) -> (i32, i32, i32) {
    %c0_i32 = arith.constant 0 : i32
    %c0_i32_0 = arith.constant 0 : i32
    %c0_i32_1 = arith.constant 0 : i32
    return %arg0, %c0_i32, %c0_i32_0 : i32, i32, i32
  }
}

module attributes {stable_mosaic.version = 11 : i64} {
  func.func @_matmul_stats_kernel(%arg0: i32, %arg1: memref<128x4xf32, #tpu.memory_space<vmem>>, %arg2: memref<4x16xf32, #tpu.memory_space<vmem>>, %arg3: memref<128x16xf32, #tpu.memory_space<vmem>>, %arg4: memref<1x2x16xf32, #tpu.memory_space<vmem>>) attributes {dimension_semantics = [#tpu.dimension_semantics<parallel>], iteration_bounds = array<i64: 1>, scalar_prefetch = 0 : i64, scratch_operands = 0 : i64, tpu.core_type = #tpu.core_type<tc>, window_params = [{transform_indices = @transform_0, window_bounds = array<i64: 128, 4>}, {pipeline_mode = #tpu.pipeline_mode<synchronous>, transform_indices = @transform_1, window_bounds = array<i64: 4, 16>}, {transform_indices = @transform_2, window_bounds = array<i64: 128, 16>}, {transform_indices = @transform_3, window_bounds = array<i64: 1, 2, 16>}]} {
    %c0 = arith.constant 0 : index
    %c0_0 = arith.constant 0 : index
    %0 = vector.load %arg1[%c0, %c0_0] : memref<128x4xf32, #tpu.memory_space<vmem>>, vector<128x4xf32>
    %c0_1 = arith.constant 0 : index
    %c0_2 = arith.constant 0 : index
    %1 = vector.load %arg2[%c0_1, %c0_2] : memref<4x16xf32, #tpu.memory_space<vmem>>, vector<4x16xf32>
    %cst = arith.constant dense<0.000000e+00> : vector<128x16xf32>
    %2 = tpu.matmul %0, %1, %cst {dimension_numbers = #tpu.dot_dimension_numbers<[1], [0], [0], [1], [0, 0, 1, 1], [], []>} : vector<128x4xf32>, vector<4x16xf32>, vector<128x16xf32> -> vector<128x16xf32>
    %c0_3 = arith.constant 0 : index
    %c0_4 = arith.constant 0 : index
    %3 = vector.load %arg3[%c0_3, %c0_4] : memref<128x16xf32, #tpu.memory_space<vmem>>, vector<128x16xf32>
    tpu.vector_store %arg3[%c0_3, %c0_4], %2 {strides = array<i32>} : memref<128x16xf32, #tpu.memory_space<vmem>>, vector<128x16xf32>,
    %cst_5 = arith.constant dense<0.000000e+00> : vector<16xf32>
    %4 = vector.multi_reduction <add>, %2, %cst_5 [0] : vector<128x16xf32> to vector<16xf32>
    %5 = vector.shape_cast %4 : vector<16xf32> to vector<1x16xf32>
    %6 = arith.mulf %2, %2 : vector<128x16xf32>
    %cst_6 = arith.constant dense<0.000000e+00> : vector<16xf32>
    %7 = vector.multi_reduction <add>, %6, %cst_6 [0] : vector<128x16xf32> to vector<16xf32>
    %8 = vector.shape_cast %7 : vector<16xf32> to vector<1x16xf32>
    %9 = tpu.concatenate %5, %8 in 0 : vector<1x16xf32>, vector<1x16xf32> -> vector<2x16xf32>
    %10 = vector.shape_cast %9 : vector<2x16xf32> to vector<1x2x16xf32>
    %c0_7 = arith.constant 0 : index
    %c0_8 = arith.constant 0 : index
    %c0_9 = arith.constant 0 : index
    %11 = vector.load %arg4[%c0_7, %c0_8, %c0_9] : memref<1x2x16xf32, #tpu.memory_space<vmem>>, vector<1x2x16xf32>
    tpu.vector_store %arg4[%c0_7, %c0_8, %c0_9], %10 {strides = array<i32>} : memref<1x2x16xf32, #tpu.memory_space<vmem>>, vector<1x2x16xf32>,
    return
  }
  func.func @transform_0(%arg0: i32) -> (i32, i32) {
    %c0_i32 = arith.constant 0 : i32
    %c0_i32_0 = arith.constant 0 : i32
    return %arg0, %c0_i32 : i32, i32
  }
  func.func @transform_1(%arg0: i32) -> (i32, i32) {
    %c0_i32 = arith.constant 0 : i32
    %c0_i32_0 = arith.constant 0 : i32
    %c0_i32_1 = arith.constant 0 : i32
    return %c0_i32, %c0_i32_0 : i32, i32
  }
  func.func @transform_2(%arg0: i32) -> (i32, i32) {
    %c0_i32 = arith.constant 0 : i32
    %c0_i32_0 = arith.constant 0 : i32
    return %arg0, %c0_i32 : i32, i32
  }
  func.func @transform_3(%arg0: i32) -> (i32, i32, i32) {
    %c0_i32 = arith.constant 0 : i32
    %c0_i32_0 = arith.constant 0 : i32
    %c0_i32_1 = arith.constant 0 : i32
    return %arg0, %c0_i32, %c0_i32_0 : i32, i32, i32
  }
}

module attributes {stable_mosaic.version = 11 : i64} {
  func.func @_residual_out_kernel(%arg0: i32, %arg1: memref<128x16xf32, #tpu.memory_space<vmem>>, %arg2: memref<1x16xf32, #tpu.memory_space<vmem>>, %arg3: memref<1x16xf32, #tpu.memory_space<vmem>>, %arg4: memref<128x16xf32, #tpu.memory_space<vmem>>, %arg5: memref<1x16xf32, #tpu.memory_space<vmem>>, %arg6: memref<1x16xf32, #tpu.memory_space<vmem>>, %arg7: memref<128x16xf32, #tpu.memory_space<vmem>>) attributes {dimension_semantics = [#tpu.dimension_semantics<parallel>], iteration_bounds = array<i64: 1>, scalar_prefetch = 0 : i64, scratch_operands = 0 : i64, tpu.core_type = #tpu.core_type<tc>, window_params = [{transform_indices = @transform_0, window_bounds = array<i64: 128, 16>}, {pipeline_mode = #tpu.pipeline_mode<synchronous>, transform_indices = @transform_1, window_bounds = array<i64: 1, 16>}, {pipeline_mode = #tpu.pipeline_mode<synchronous>, transform_indices = @transform_2, window_bounds = array<i64: 1, 16>}, {transform_indices = @transform_3, window_bounds = array<i64: 128, 16>}, {pipeline_mode = #tpu.pipeline_mode<synchronous>, transform_indices = @transform_4, window_bounds = array<i64: 1, 16>}, {pipeline_mode = #tpu.pipeline_mode<synchronous>, transform_indices = @transform_5, window_bounds = array<i64: 1, 16>}, {transform_indices = @transform_6, window_bounds = array<i64: 128, 16>}]} {
    %c0 = arith.constant 0 : index
    %c0_0 = arith.constant 0 : index
    %0 = vector.load %arg1[%c0, %c0_0] : memref<128x16xf32, #tpu.memory_space<vmem>>, vector<128x16xf32>
    %c0_1 = arith.constant 0 : index
    %c0_2 = arith.constant 0 : index
    %1 = vector.load %arg2[%c0_1, %c0_2] : memref<1x16xf32, #tpu.memory_space<vmem>>, vector<1x16xf32>
    %2 = vector.broadcast %1 : vector<1x16xf32> to vector<128x16xf32>
    %3 = arith.mulf %0, %2 : vector<128x16xf32>
    %c0_3 = arith.constant 0 : index
    %c0_4 = arith.constant 0 : index
    %4 = vector.load %arg3[%c0_3, %c0_4] : memref<1x16xf32, #tpu.memory_space<vmem>>, vector<1x16xf32>
    %5 = vector.broadcast %4 : vector<1x16xf32> to vector<128x16xf32>
    %6 = arith.addf %3, %5 : vector<128x16xf32>
    %c0_5 = arith.constant 0 : index
    %c0_6 = arith.constant 0 : index
    %7 = vector.load %arg4[%c0_5, %c0_6] : memref<128x16xf32, #tpu.memory_space<vmem>>, vector<128x16xf32>
    %c0_7 = arith.constant 0 : index
    %c0_8 = arith.constant 0 : index
    %8 = vector.load %arg5[%c0_7, %c0_8] : memref<1x16xf32, #tpu.memory_space<vmem>>, vector<1x16xf32>
    %9 = vector.broadcast %8 : vector<1x16xf32> to vector<128x16xf32>
    %10 = arith.mulf %7, %9 : vector<128x16xf32>
    %c0_9 = arith.constant 0 : index
    %c0_10 = arith.constant 0 : index
    %11 = vector.load %arg6[%c0_9, %c0_10] : memref<1x16xf32, #tpu.memory_space<vmem>>, vector<1x16xf32>
    %12 = vector.broadcast %11 : vector<1x16xf32> to vector<128x16xf32>
    %13 = arith.addf %10, %12 : vector<128x16xf32>
    %14 = arith.addf %6, %13 : vector<128x16xf32>
    %cst = arith.constant 0.000000e+00 : f32
    %15 = vector.broadcast %cst : f32 to vector<128x16xf32>
    %16 = arith.maximumf %14, %15 : vector<128x16xf32>
    %c0_11 = arith.constant 0 : index
    %c0_12 = arith.constant 0 : index
    %17 = vector.load %arg7[%c0_11, %c0_12] : memref<128x16xf32, #tpu.memory_space<vmem>>, vector<128x16xf32>
    tpu.vector_store %arg7[%c0_11, %c0_12], %16 {strides = array<i32>} : memref<128x16xf32, #tpu.memory_space<vmem>>, vector<128x16xf32>,
    return
  }
  func.func @transform_0(%arg0: i32) -> (i32, i32) {
    %c0_i32 = arith.constant 0 : i32
    %c0_i32_0 = arith.constant 0 : i32
    return %arg0, %c0_i32 : i32, i32
  }
  func.func @transform_1(%arg0: i32) -> (i32, i32) {
    %c0_i32 = arith.constant 0 : i32
    %c0_i32_0 = arith.constant 0 : i32
    %c0_i32_1 = arith.constant 0 : i32
    return %c0_i32, %c0_i32_0 : i32, i32
  }
  func.func @transform_2(%arg0: i32) -> (i32, i32) {
    %c0_i32 = arith.constant 0 : i32
    %c0_i32_0 = arith.constant 0 : i32
    %c0_i32_1 = arith.constant 0 : i32
    return %c0_i32, %c0_i32_0 : i32, i32
  }
  func.func @transform_3(%arg0: i32) -> (i32, i32) {
    %c0_i32 = arith.constant 0 : i32
    %c0_i32_0 = arith.constant 0 : i32
    return %arg0, %c0_i32 : i32, i32
  }
  func.func @transform_4(%arg0: i32) -> (i32, i32) {
    %c0_i32 = arith.constant 0 : i32
    %c0_i32_0 = arith.constant 0 : i32
    %c0_i32_1 = arith.constant 0 : i32
    return %c0_i32, %c0_i32_0 : i32, i32
  }
  func.func @transform_5(%arg0: i32) -> (i32, i32) {
    %c0_i32 = arith.constant 0 : i32
    %c0_i32_0 = arith.constant 0 : i32
    %c0_i32_1 = arith.constant 0 : i32
    return %c0_i32, %c0_i32_0 : i32, i32
  }
  func.func @transform_6(%arg0: i32) -> (i32, i32) {
    %c0_i32 = arith.constant 0 : i32
    %c0_i32_0 = arith.constant 0 : i32
    return %arg0, %c0_i32 : i32, i32
  }
}

</mosaic_0001>

<llo_original>
// kernel: bottleneck_forward.7
$region0: #{bottleneck_forward.7}
  #allocation0 [shape = 'u32[]', space=smem, size = 0x4, offset = 0x4, fixed_abs, tag = 'smem constant byte address 0x4 - core index']
  #allocation1 [shape = 'u32[144,128]{1,0:T(1,128)}', space=vmem, size = 0x12000, scoped, tag = 'internal scratch']
  %s0 = inlined_call_operand.vmem [shape: f32[512,4], index: 0, kind: input, shape index: {}]
  %s1 = inlined_call_operand.vmem [shape: f32[1,4], index: 1, kind: input, shape index: {}]
  %s2 = inlined_call_operand.vmem [shape: f32[1,4], index: 2, kind: input, shape index: {}]
  %s3 = inlined_call_operand.vmem [shape: f32[512,4], index: 3, kind: output, shape index: {}]
  %s4 = sld [smem:[#allocation0]]
  $region45: #{bottleneck_forward.7} parent=0
    _
  %s6 = ssub.s32 1, %s4
  %s7 = scalar_select 0, %s6, %s4
  loop: start=0, step=1, limit=6
  $region2: #{bottleneck_forward.7} parent=0 // loop_pre_header
    _
  $region3: #{bottleneck_forward.7} parent=0 // loop_header
    %s9 = sphi 0, %s13
    %p10 = scmp.ge.s32.totalorder %s9, 6
    %s19 = sphi 0, %s21
    %s22 = sphi 0, %s19
    %s23 = sphi 0, %s22
    %s39 = sphi 0, %s23
    %s43 = sphi 0, %s43
    %s45 = sphi 0, %s43
    %s46 = sphi 0, %s45
    %s60 = sphi 0, %s46
    %s64 = sphi 0, %s64
    %s66 = sphi 0, %s64
    %s67 = sphi 0, %s66
    %s81 = sphi 0, %s67
    %s87 = sphi 0, %s89
    %s90 = sphi 0, %s87
    %s91 = sphi 0, %s90
    %s107 = sphi 0, %s91
  $region4: #{bottleneck_forward.7} parent=0 // loop_header_branch
    %12 = sbr.rel (%p10) target = $region8
  $region5: #{bottleneck_forward.7} parent=0 // loop_body
    %s14 = ssub.s32 %s9, 1
    %s15 = ssub.s32 %s9, 2
    %s16 = sadd.s32 %s9, 1
    %s17 = ssub.s32 %s9, %s16
    %p18 = scmp.eq.s32.totalorder %s17, 0
    %s20 = sadd.s32 %s19, 1
    %s21 = scalar_select %p18, %s19, %s20
    %p24 = pneg %p18
    %p25 = scmp.eq.s32.totalorder %s9, 3
    %p26 = por %p24, %p25
    %p27 = scmp.ne.s32.totalorder %s19, %s22
    %p28 = scmp.eq.s32.totalorder %s9, 0
    %p29 = por %p27, %p28
    %p30 = scmp.ne.s32.totalorder %s19, %s22
    %p31 = scmp.eq.s32.totalorder %s14, 3
    %p32 = por %p30, %p31
    %p33 = scmp.ne.s32.totalorder %s22, %s23
    %p34 = scmp.eq.s32.totalorder %s14, 0
    %p35 = por %p33, %p34
    %p36 = scmp.ne.s32.totalorder %s22, %s23
    %p37 = scmp.eq.s32.totalorder %s15, 3
    %p38 = por %p36, %p37
    %p40 = scmp.ne.s32.totalorder %s23, %s39
    %p41 = scmp.eq.s32.totalorder %s15, 0
    %p42 = por %p40, %p41
    %s44 = sadd.s32 %s43, 1
    %p47 = scmp.eq.s32.totalorder %s9, 3
    %p48 = scmp.ne.s32.totalorder %s43, %s45
    %p49 = scmp.eq.s32.totalorder %s9, 0
    %p50 = por %p48, %p49
    %p51 = scmp.ne.s32.totalorder %s43, %s45
    %p52 = scmp.eq.s32.totalorder %s14, 3
    %p53 = por %p51, %p52
    %p54 = scmp.ne.s32.totalorder %s45, %s46
    %p55 = scmp.eq.s32.totalorder %s14, 0
    %p56 = por %p54, %p55
    %p57 = scmp.ne.s32.totalorder %s45, %s46
    %p58 = scmp.eq.s32.totalorder %s15, 3
    %p59 = por %p57, %p58
    %p61 = scmp.ne.s32.totalorder %s46, %s60
    %p62 = scmp.eq.s32.totalorder %s15, 0
    %p63 = por %p61, %p62
    %s65 = sadd.s32 %s64, 1
    %p68 = scmp.eq.s32.totalorder %s9, 3
    %p69 = scmp.ne.s32.totalorder %s64, %s66
    %p70 = scmp.eq.s32.totalorder %s9, 0
    %p71 = por %p69, %p70
    %p72 = scmp.ne.s32.totalorder %s64, %s66
    %p73 = scmp.eq.s32.totalorder %s14, 3
    %p74 = por %p72, %p73
    %p75 = scmp.ne.s32.totalorder %s66, %s67
    %p76 = scmp.eq.s32.totalorder %s14, 0
    %p77 = por %p75, %p76
    %p78 = scmp.ne.s32.totalorder %s66, %s67
    %p79 = scmp.eq.s32.totalorder %s15, 3
    %p80 = por %p78, %p79
    %p82 = scmp.ne.s32.totalorder %s67, %s81
    %p83 = scmp.eq.s32.totalorder %s15, 0
    %p84 = por %p82, %p83
    %s85 = ssub.s32 %s9, %s16
    %p86 = scmp.eq.s32.totalorder %s85, 0
    %s88 = sadd.s32 %s87, 1
    %s89 = scalar_select %p86, %s87, %s88
    %p92 = pneg %p86
    %p93 = scmp.eq.s32.totalorder %s9, 3
    %p94 = por %p92, %p93
    %p95 = scmp.ne.s32.totalorder %s87, %s90
    %p96 = scmp.eq.s32.totalorder %s9, 0
    %p97 = por %p95, %p96
    %p98 = scmp.ne.s32.totalorder %s87, %s90
    %p99 = scmp.eq.s32.totalorder %s14, 3
    %p100 = por %p98, %p99
    %p101 = scmp.ne.s32.totalorder %s90, %s91
    %p102 = scmp.eq.s32.totalorder %s14, 0
    %p103 = por %p101, %p102
    %p104 = scmp.ne.s32.totalorder %s90, %s91
    %p105 = scmp.eq.s32.totalorder %s15, 3
    %p106 = por %p104, %p105
    %p108 = scmp.ne.s32.totalorder %s91, %s107
    %p109 = scmp.eq.s32.totalorder %s15, 0
    %p110 = por %p108, %p109
    %p111 = scmp.le.s32.totalorder 1, %s9
    %p112 = scmp.lt.s32.totalorder %s9, 5
    %p113 = pnand %p111, %p112
    %p114 = pneg %p113
    // Predicated region
    $region9: #{bottleneck_forward.7} parent=5 // pred_check
      _
    $region10: #{bottleneck_forward.7} parent=5 // pred_check_branch
      %116 = sbr.rel (%p113) target = $region12
    $region11: #{bottleneck_forward.7} parent=5 // pred_region
      %s117 = ssub.s32 %s9, 1
      // Predicated region
      $region13: #{bottleneck_forward.7} parent=11 // pred_check
        %p118 = pneg %p56
      $region14: #{bottleneck_forward.7} parent=11 // pred_check_branch
        %120 = sbr.rel (%p118) target = $region16
      $region15: #{bottleneck_forward.7} parent=11 // pred_region
        _
      $region16: #{bottleneck_forward.7} parent=11 // pred_fallthru
        _
      // Predicated region
      $region17: #{bottleneck_forward.7} parent=11 // pred_check
        %p121 = pneg %p77
      $region18: #{bottleneck_forward.7} parent=11 // pred_check_branch
        %123 = sbr.rel (%p121) target = $region20
      $region19: #{bottleneck_forward.7} parent=11 // pred_region
        _
      $region20: #{bottleneck_forward.7} parent=11 // pred_fallthru
        _
    $region12: #{bottleneck_forward.7} parent=5 // pred_fallthru
      _
    %p124 = scmp.lt.s32.totalorder %s9, 4
    // Predicated region
    $region21: #{bottleneck_forward.7} parent=5 // pred_check
      %p125 = pneg %p124
    $region22: #{bottleneck_forward.7} parent=5 // pred_check_branch
      %127 = sbr.rel (%p125) target = $region24
    $region23: #{bottleneck_forward.7} parent=5 // pred_region
      // Predicated region
      $region25: #{bottleneck_forward.7} parent=23 // pred_check
        %p128 = pneg %p29
      $region26: #{bottleneck_forward.7} parent=23 // pred_check_branch
        %130 = sbr.rel (%p128) target = $region28
      $region27: #{bottleneck_forward.7} parent=23 // pred_region
        %s131 = smul.u32 16, %s9
        %p132 = scmp.lt.s32.totalorder %s131, 63
        %s133 = scalar_select %p132, %s131, 63
        %s134 = smul.addr %s133, 8
        %s135 = scalar_lea.vmem %s0, %s134
        %s136 = smul.u32 16, %s9
      $region28: #{bottleneck_forward.7} parent=23 // pred_fallthru
        _
    $region24: #{bottleneck_forward.7} parent=5 // pred_fallthru
      _
    %p137 = scmp.le.s32.totalorder 1, %s9
    %p138 = scmp.lt.s32.totalorder %s9, 5
    %p139 = pnand %p137, %p138
    %p140 = pneg %p139
    // Predicated region
    $region29: #{bottleneck_forward.7} parent=5 // pred_check
      _
    $region30: #{bottleneck_forward.7} parent=5 // pred_check_branch
      %142 = sbr.rel (%p139) target = $region32
    $region31: #{bottleneck_forward.7} parent=5 // pred_region
      %s143 = ssub.s32 %s9, 1
      %s144 = smul.u32 16, %s14
      %p145 = scmp.lt.s32.totalorder %s144, 63
      %s146 = scalar_select %p145, %s144, 63
      %s147 = smul.addr %s146, 8
      %s148 = scalar_lea.vmem %s0, %s147
      %p149 = pneg %p35
      %p150 = pneg %p32
      %p151 = pneg %p56
      %p152 = pneg %p53
      %p153 = pneg %p77
      %p154 = pneg %p74
      %p155 = pneg %p103
      %p156 = pneg %p100
      %s157 = smul.u32 16, %s14
      %p158 = scmp.lt.s32.totalorder %s157, 63
      %s159 = scalar_select %p158, %s157, 63
      %s160 = smul.addr %s159, 8
      %s161 = scalar_lea.vmem %s3, %s160
      %s162 = smul.u32 16, %s14
      %p163 = scmp.lt.s32.totalorder %s162, 63
      %s164 = scalar_select %p163, %s162, 63
      %s165 = smul.addr %s164, 8
      %s166 = scalar_lea.vmem %s0, %s165
      %s167 = smul.u32 16, %s14
      %s168 = smul.u32 16, %s14
      %p169 = scmp.lt.s32.totalorder %s168, 63
      %s170 = scalar_select %p169, %s168, 63
      %s171 = smul.addr %s170, 8
      %s172 = scalar_lea.vmem %s3, %s171
      %s173 = smul.u32 16, %s14
      %v174 = vld [vmem:[%s166] sm:$0xff]
      %v175 = vld [vmem:[%s166 + $0x8] sm:$0xff]
      %v176 = vld [vmem:[%s166 + $0x10] sm:$0xff]
      %v177 = vld [vmem:[%s166 + $0x18] sm:$0xff]
      %v178 = vld [vmem:[%s166 + $0x20] sm:$0xff]
      %v179 = vld [vmem:[%s166 + $0x28] sm:$0xff]
      %v180 = vld [vmem:[%s166 + $0x30] sm:$0xff]
      %v181 = vld [vmem:[%s166 + $0x38] sm:$0xff]
      %v182 = vld [vmem:[%s166 + $0x40] sm:$0xff]
      %v183 = vld [vmem:[%s166 + $0x48] sm:$0xff]
      %v184 = vld [vmem:[%s166 + $0x50] sm:$0xff]
      %v185 = vld [vmem:[%s166 + $0x58] sm:$0xff]
      %v186 = vld [vmem:[%s166 + $0x60] sm:$0xff]
      %v187 = vld [vmem:[%s166 + $0x68] sm:$0xff]
      %v188 = vld [vmem:[%s166 + $0x70] sm:$0xff]
      %v189 = vld [vmem:[%s166 + $0x78] sm:$0xff]
      %v190 = vld [vmem:[%s1] sm:$0x1]
      %v192 = vlaneseq
      %v193 = vshrl.u32 %v192, 7
      %v194 = vsub.s32 0, %v193
      %v195 = vrot.slane %v190, %v194
      %v197 = vmul.f32 %v174, %v195
      %v198 = vmul.f32 %v175, %v195
      %v199 = vmul.f32 %v176, %v195
      %v200 = vmul.f32 %v177, %v195
      %v201 = vmul.f32 %v178, %v195
      %v202 = vmul.f32 %v179, %v195
      %v203 = vmul.f32 %v180, %v195
      %v204 = vmul.f32 %v181, %v195
      %v205 = vmul.f32 %v182, %v195
      %v206 = vmul.f32 %v183, %v195
      %v207 = vmul.f32 %v184, %v195
      %v208 = vmul.f32 %v185, %v195
      %v209 = vmul.f32 %v186, %v195
      %v210 = vmul.f32 %v187, %v195
      %v211 = vmul.f32 %v188, %v195
      %v212 = vmul.f32 %v189, %v195
      %v213 = vld [vmem:[%s2] sm:$0x1]
      %v215 = vlaneseq
      %v216 = vshrl.u32 %v215, 7
      %v217 = vsub.s32 0, %v216
      %v218 = vrot.slane %v213, %v217
      %v220 = vadd.f32 %v197, %v218
      %v221 = vadd.f32 %v198, %v218
      %v222 = vadd.f32 %v199, %v218
      %v223 = vadd.f32 %v200, %v218
      %v224 = vadd.f32 %v201, %v218
      %v225 = vadd.f32 %v202, %v218
      %v226 = vadd.f32 %v203, %v218
      %v227 = vadd.f32 %v204, %v218
      %v228 = vadd.f32 %v205, %v218
      %v229 = vadd.f32 %v206, %v218
      %v230 = vadd.f32 %v207, %v218
      %v231 = vadd.f32 %v208, %v218
      %v232 = vadd.f32 %v209, %v218
      %v233 = vadd.f32 %v210, %v218
      %v234 = vadd.f32 %v211, %v218
      %v235 = vadd.f32 %v212, %v218
      %v236 = vmax.f32 %v220, 0.0
      %v237 = vmax.f32 %v221, 0.0
      %v238 = vmax.f32 %v222, 0.0
      %v239 = vmax.f32 %v223, 0.0
      %v240 = vmax.f32 %v224, 0.0
      %v241 = vmax.f32 %v225, 0.0
      %v242 = vmax.f32 %v226, 0.0
      %v243 = vmax.f32 %v227, 0.0
      %v244 = vmax.f32 %v228, 0.0
      %v245 = vmax.f32 %v229, 0.0
      %v246 = vmax.f32 %v230, 0.0
      %v247 = vmax.f32 %v231, 0.0
      %v248 = vmax.f32 %v232, 0.0
      %v249 = vmax.f32 %v233, 0.0
      %v250 = vmax.f32 %v234, 0.0
      %v251 = vmax.f32 %v235, 0.0
      %vm252 = vcmask 31744
      %253 = vst.msk [vmem:[%s172] sm:$0xff] %vm252, %v236
      %254 = vst.msk [vmem:[%s172 + $0x8] sm:$0xff] %vm252, %v237
      %255 = vst.msk [vmem:[%s172 + $0x10] sm:$0xff] %vm252, %v238
      %256 = vst.msk [vmem:[%s172 + $0x18] sm:$0xff] %vm252, %v239
      %257 = vst.msk [vmem:[%s172 + $0x20] sm:$0xff] %vm252, %v240
      %258 = vst.msk [vmem:[%s172 + $0x28] sm:$0xff] %vm252, %v241
      %259 = vst.msk [vmem:[%s172 + $0x30] sm:$0xff] %vm252, %v242
      %260 = vst.msk [vmem:[%s172 + $0x38] sm:$0xff] %vm252, %v243
      %261 = vst.msk [vmem:[%s172 + $0x40] sm:$0xff] %vm252, %v244
      %262 = vst.msk [vmem:[%s172 + $0x48] sm:$0xff] %vm252, %v245
      %263 = vst.msk [vmem:[%s172 + $0x50] sm:$0xff] %vm252, %v246
      %264 = vst.msk [vmem:[%s172 + $0x58] sm:$0xff] %vm252, %v247
      %265 = vst.msk [vmem:[%s172 + $0x60] sm:$0xff] %vm252, %v248
      %266 = vst.msk [vmem:[%s172 + $0x68] sm:$0xff] %vm252, %v249
      %267 = vst.msk [vmem:[%s172 + $0x70] sm:$0xff] %vm252, %v250
      %268 = vst.msk [vmem:[%s172 + $0x78] sm:$0xff] %vm252, %v251
      %s269 = smul.u32 16, %s14
      %p270 = scmp.lt.s32.totalorder %s269, 63
      %s271 = scalar_select %p270, %s269, 63
      %s272 = smul.addr %s271, 8
      %s273 = scalar_lea.vmem %s3, %s272
      // Predicated region
      $region33: #{bottleneck_forward.7} parent=31 // pred_check
        %p274 = pneg %p100
      $region34: #{bottleneck_forward.7} parent=31 // pred_check_branch
        %276 = sbr.rel (%p274) target = $region36
      $region35: #{bottleneck_forward.7} parent=31 // pred_region
        %s277 = smul.u32 16, %s14
      $region36: #{bottleneck_forward.7} parent=31 // pred_fallthru
        _
    $region32: #{bottleneck_forward.7} parent=5 // pred_fallthru
      _
    %p278 = scmp.le.s32.totalorder 2, %s9
    // Predicated region
    $region37: #{bottleneck_forward.7} parent=5 // pred_check
      %p279 = pneg %p278
    $region38: #{bottleneck_forward.7} parent=5 // pred_check_branch
      %281 = sbr.rel (%p279) target = $region40
    $region39: #{bottleneck_forward.7} parent=5 // pred_region
      %s282 = ssub.s32 %s9, 2
      // Predicated region
      $region41: #{bottleneck_forward.7} parent=39 // pred_check
        %p283 = pneg %p106
      $region42: #{bottleneck_forward.7} parent=39 // pred_check_branch
        %285 = sbr.rel (%p283) target = $region44
      $region43: #{bottleneck_forward.7} parent=39 // pred_region
        %s286 = smul.u32 16, %s15
        %p287 = scmp.lt.s32.totalorder %s286, 63
        %s288 = scalar_select %p287, %s286, 63
        %s289 = smul.addr %s288, 8
        %s290 = scalar_lea.vmem %s3, %s289
      $region44: #{bottleneck_forward.7} parent=39 // pred_fallthru
        _
    $region40: #{bottleneck_forward.7} parent=5 // pred_fallthru
      _
  $region6: #{bottleneck_forward.7} parent=0 // loop_footer
    %s13 = sadd.s32 1, %s9
  $region7: #{bottleneck_forward.7} parent=0 // loop_footer_branch
    %8 = sbr.rel target = $region3
  $region8: #{bottleneck_forward.7} parent=0 // loop_exit
    _

// kernel: bottleneck_forward.6
$region0: #{bottleneck_forward.6}
  #allocation0 [shape = 'u32[]', space=smem, size = 0x4, offset = 0x4, fixed_abs, tag = 'smem constant byte address 0x4 - core index']
  #allocation1 [shape = 'u32[144,128]{1,0:T(1,128)}', space=vmem, size = 0x12000, scoped, tag = 'internal scratch']
  %s0 = inlined_call_operand.vmem [shape: f32[512,4], index: 0, kind: input, shape index: {}]
  %s1 = inlined_call_operand.vmem [shape: f32[4,4], index: 1, kind: input, shape index: {}]
  %s2 = inlined_call_operand.vmem [shape: f32[512,4], index: 2, kind: output, shape index: {0}]
  %s3 = inlined_call_operand.vmem [shape: f32[4,2,4], index: 3, kind: output, shape index: {1}]
  %4 = xla_tuple %s2, %s3
  %s5 = sld [smem:[#allocation0]]
  $region49: #{bottleneck_forward.6} parent=0
    _
  %s7 = ssub.s32 1, %s5
  %s8 = scalar_select 0, %s7, %s5
  loop: start=0, step=1, limit=6
  $region2: #{bottleneck_forward.6} parent=0 // loop_pre_header
    _
  $region3: #{bottleneck_forward.6} parent=0 // loop_header
    %s10 = sphi 0, %s14
    %p11 = scmp.ge.s32.totalorder %s10, 6
    %s20 = sphi 0, %s22
    %s23 = sphi 0, %s20
    %s24 = sphi 0, %s23
    %s40 = sphi 0, %s24
    %s44 = sphi 0, %s44
    %s46 = sphi 0, %s44
    %s47 = sphi 0, %s46
    %s61 = sphi 0, %s47
    %s67 = sphi 0, %s69
    %s70 = sphi 0, %s67
    %s71 = sphi 0, %s70
    %s87 = sphi 0, %s71
    %s93 = sphi 0, %s95
    %s96 = sphi 0, %s93
    %s97 = sphi 0, %s96
    %s113 = sphi 0, %s97
  $region4: #{bottleneck_forward.6} parent=0 // loop_header_branch
    %13 = sbr.rel (%p11) target = $region8
  $region5: #{bottleneck_forward.6} parent=0 // loop_body
    %s15 = ssub.s32 %s10, 1
    %s16 = ssub.s32 %s10, 2
    %s17 = sadd.s32 %s10, 1
    %s18 = ssub.s32 %s10, %s17
    %p19 = scmp.eq.s32.totalorder %s18, 0
    %s21 = sadd.s32 %s20, 1
    %s22 = scalar_select %p19, %s20, %s21
    %p25 = pneg %p19
    %p26 = scmp.eq.s32.totalorder %s10, 3
    %p27 = por %p25, %p26
    %p28 = scmp.ne.s32.totalorder %s20, %s23
    %p29 = scmp.eq.s32.totalorder %s10, 0
    %p30 = por %p28, %p29
    %p31 = scmp.ne.s32.totalorder %s20, %s23
    %p32 = scmp.eq.s32.totalorder %s15, 3
    %p33 = por %p31, %p32
    %p34 = scmp.ne.s32.totalorder %s23, %s24
    %p35 = scmp.eq.s32.totalorder %s15, 0
    %p36 = por %p34, %p35
    %p37 = scmp.ne.s32.totalorder %s23, %s24
    %p38 = scmp.eq.s32.totalorder %s16, 3
    %p39 = por %p37, %p38
    %p41 = scmp.ne.s32.totalorder %s24, %s40
    %p42 = scmp.eq.s32.totalorder %s16, 0
    %p43 = por %p41, %p42
    %s45 = sadd.s32 %s44, 1
    %p48 = scmp.eq.s32.totalorder %s10, 3
    %p49 = scmp.ne.s32.totalorder %s44, %s46
    %p50 = scmp.eq.s32.totalorder %s10, 0
    %p51 = por %p49, %p50
    %p52 = scmp.ne.s32.totalorder %s44, %s46
    %p53 = scmp.eq.s32.totalorder %s15, 3
    %p54 = por %p52, %p53
    %p55 = scmp.ne.s32.totalorder %s46, %s47
    %p56 = scmp.eq.s32.totalorder %s15, 0
    %p57 = por %p55, %p56
    %p58 = scmp.ne.s32.totalorder %s46, %s47
    %p59 = scmp.eq.s32.totalorder %s16, 3
    %p60 = por %p58, %p59
    %p62 = scmp.ne.s32.totalorder %s47, %s61
    %p63 = scmp.eq.s32.totalorder %s16, 0
    %p64 = por %p62, %p63
    %s65 = ssub.s32 %s10, %s17
    %p66 = scmp.eq.s32.totalorder %s65, 0
    %s68 = sadd.s32 %s67, 1
    %s69 = scalar_select %p66, %s67, %s68
    %p72 = pneg %p66
    %p73 = scmp.eq.s32.totalorder %s10, 3
    %p74 = por %p72, %p73
    %p75 = scmp.ne.s32.totalorder %s67, %s70
    %p76 = scmp.eq.s32.totalorder %s10, 0
    %p77 = por %p75, %p76
    %p78 = scmp.ne.s32.totalorder %s67, %s70
    %p79 = scmp.eq.s32.totalorder %s15, 3
    %p80 = por %p78, %p79
    %p81 = scmp.ne.s32.totalorder %s70, %s71
    %p82 = scmp.eq.s32.totalorder %s15, 0
    %p83 = por %p81, %p82
    %p84 = scmp.ne.s32.totalorder %s70, %s71
    %p85 = scmp.eq.s32.totalorder %s16, 3
    %p86 = por %p84, %p85
    %p88 = scmp.ne.s32.totalorder %s71, %s87
    %p89 = scmp.eq.s32.totalorder %s16, 0
    %p90 = por %p88, %p89
    %s91 = ssub.s32 %s10, %s17
    %p92 = scmp.eq.s32.totalorder %s91, 0
    %s94 = sadd.s32 %s93, 1
    %s95 = scalar_select %p92, %s93, %s94
    %p98 = pneg %p92
    %p99 = scmp.eq.s32.totalorder %s10, 3
    %p100 = por %p98, %p99
    %p101 = scmp.ne.s32.totalorder %s93, %s96
    %p102 = scmp.eq.s32.totalorder %s10, 0
    %p103 = por %p101, %p102
    %p104 = scmp.ne.s32.totalorder %s93, %s96
    %p105 = scmp.eq.s32.totalorder %s15, 3
    %p106 = por %p104, %p105
    %p107 = scmp.ne.s32.totalorder %s96, %s97
    %p108 = scmp.eq.s32.totalorder %s15, 0
    %p109 = por %p107, %p108
    %p110 = scmp.ne.s32.totalorder %s96, %s97
    %p111 = scmp.eq.s32.totalorder %s16, 3
    %p112 = por %p110, %p111
    %p114 = scmp.ne.s32.totalorder %s97, %s113
    %p115 = scmp.eq.s32.totalorder %s16, 0
    %p116 = por %p114, %p115
    %p117 = scmp.le.s32.totalorder 1, %s10
    %p118 = scmp.lt.s32.totalorder %s10, 5
    %p119 = pnand %p117, %p118
    %p120 = pneg %p119
    // Predicated region
    $region9: #{bottleneck_forward.6} parent=5 // pred_check
      _
    $region10: #{bottleneck_forward.6} parent=5 // pred_check_branch
      %122 = sbr.rel (%p119) target = $region12
    $region11: #{bottleneck_forward.6} parent=5 // pred_region
      %s123 = ssub.s32 %s10, 1
      // Predicated region
      $region13: #{bottleneck_forward.6} parent=11 // pred_check
        %p124 = pneg %p57
      $region14: #{bottleneck_forward.6} parent=11 // pred_check_branch
        %126 = sbr.rel (%p124) target = $region16
      $region15: #{bottleneck_forward.6} parent=11 // pred_region
        _
      $region16: #{bottleneck_forward.6} parent=11 // pred_fallthru
        _
    $region12: #{bottleneck_forward.6} parent=5 // pred_fallthru
      _
    %p127 = scmp.lt.s32.totalorder %s10, 4
    // Predicated region
    $region17: #{bottleneck_forward.6} parent=5 // pred_check
      %p128 = pneg %p127
    $region18: #{bottleneck_forward.6} parent=5 // pred_check_branch
      %130 = sbr.rel (%p128) target = $region20
    $region19: #{bottleneck_forward.6} parent=5 // pred_region
      // Predicated region
      $region21: #{bottleneck_forward.6} parent=19 // pred_check
        %p131 = pneg %p30
      $region22: #{bottleneck_forward.6} parent=19 // pred_check_branch
        %133 = sbr.rel (%p131) target = $region24
      $region23: #{bottleneck_forward.6} parent=19 // pred_region
        %s134 = smul.u32 16, %s10
        %p135 = scmp.lt.s32.totalorder %s134, 63
        %s136 = scalar_select %p135, %s134, 63
        %s137 = smul.addr %s136, 8
        %s138 = scalar_lea.vmem %s0, %s137
        %s139 = smul.u32 16, %s10
      $region24: #{bottleneck_forward.6} parent=19 // pred_fallthru
        _
    $region20: #{bottleneck_forward.6} parent=5 // pred_fallthru
      _
    %p140 = scmp.le.s32.totalorder 1, %s10
    %p141 = scmp.lt.s32.totalorder %s10, 5
    %p142 = pnand %p140, %p141
    %p143 = pneg %p142
    // Predicated region
    $region25: #{bottleneck_forward.6} parent=5 // pred_check
      _
    $region26: #{bottleneck_forward.6} parent=5 // pred_check_branch
      %145 = sbr.rel (%p142) target = $region28
    $region27: #{bottleneck_forward.6} parent=5 // pred_region
      %s146 = ssub.s32 %s10, 1
      %s147 = smul.u32 16, %s15
      %p148 = scmp.lt.s32.totalorder %s147, 63
      %s149 = scalar_select %p148, %s147, 63
      %s150 = smul.addr %s149, 8
      %s151 = scalar_lea.vmem %s0, %s150
      %p152 = pneg %p36
      %p153 = pneg %p33
      %p154 = pneg %p57
      %p155 = pneg %p54
      %p156 = pneg %p83
      %p157 = pneg %p80
      %s158 = smul.u32 16, %s15
      %p159 = scmp.lt.s32.totalorder %s158, 63
      %s160 = scalar_select %p159, %s158, 63
      %s161 = smul.addr %s160, 8
      %s162 = scalar_lea.vmem %s2, %s161
      %p163 = pneg %p109
      %p164 = pneg %p106
      %p165 = scmp.lt.s32.totalorder %s15, 3
      %s166 = scalar_select %p165, %s15, 3
      %s167 = smul.addr %s166, 2
      %s168 = scalar_lea.vmem %s3, %s167
      %s169 = smul.u32 16, %s15
      %p170 = scmp.lt.s32.totalorder %s169, 63
      %s171 = scalar_select %p170, %s169, 63
      %s172 = smul.addr %s171, 8
      %s173 = scalar_lea.vmem %s0, %s172
      %s174 = smul.u32 16, %s15
      %s175 = smul.u32 16, %s15
      %p176 = scmp.lt.s32.totalorder %s175, 63
      %s177 = scalar_select %p176, %s175, 63
      %s178 = smul.addr %s177, 8
      %s179 = scalar_lea.vmem %s2, %s178
      %s180 = smul.u32 16, %s15
      %p181 = scmp.lt.s32.totalorder %s15, 3
      %s182 = scalar_select %p181, %s15, 3
      %s183 = smul.addr %s182, 2
      %s184 = scalar_lea.vmem %s3, %s183
      %v185 = vld [vmem:[%s173] sm:$0xff]
      %v186 = vld [vmem:[%s173 + $0x8] sm:$0xff]
      %v187 = vld [vmem:[%s173 + $0x10] sm:$0xff]
      %v188 = vld [vmem:[%s173 + $0x18] sm:$0xff]
      %v189 = vld [vmem:[%s173 + $0x20] sm:$0xff]
      %v190 = vld [vmem:[%s173 + $0x28] sm:$0xff]
      %v191 = vld [vmem:[%s173 + $0x30] sm:$0xff]
      %v192 = vld [vmem:[%s173 + $0x38] sm:$0xff]
      %v193 = vld [vmem:[%s173 + $0x40] sm:$0xff]
      %v194 = vld [vmem:[%s173 + $0x48] sm:$0xff]
      %v195 = vld [vmem:[%s173 + $0x50] sm:$0xff]
      %v196 = vld [vmem:[%s173 + $0x58] sm:$0xff]
      %v197 = vld [vmem:[%s173 + $0x60] sm:$0xff]
      %v198 = vld [vmem:[%s173 + $0x68] sm:$0xff]
      %v199 = vld [vmem:[%s173 + $0x70] sm:$0xff]
      %v200 = vld [vmem:[%s173 + $0x78] sm:$0xff]
      %v201 = vld [vmem:[%s1] sm:$0xf]
      %vm202 = vcmask 31744
      %v204 = vsel %vm202, %v185, 0
      %v207 = vsel %vm202, %v186, 0
      %v210 = vsel %vm202, %v187, 0
      %v213 = vsel %vm202, %v188, 0
      %v216 = vsel %vm202, %v189, 0
      %v219 = vsel %vm202, %v190, 0
      %v222 = vsel %vm202, %v191, 0
      %v225 = vsel %vm202, %v192, 0
      %v228 = vsel %vm202, %v193, 0
      %v231 = vsel %vm202, %v194, 0
      %v234 = vsel %vm202, %v195, 0
      %v237 = vsel %vm202, %v196, 0
      %v240 = vsel %vm202, %v197, 0
      %v243 = vsel %vm202, %v198, 0
      %v246 = vsel %vm202, %v199, 0
      %v249 = vsel %vm202, %v200, 0
      %vm251 = vcmask 1043456
      %v253 = vsel %vm251, %v201, 0
      %255 = vmatprep.subr.mxu0 0.0
      %256 = vmatpush1.msra.mxu0 0.0
      %257 = vmatprep.subr.mxu0 0.0
      %258 = vmatpush1.msra.mxu0 0.0
      %259 = vmatprep.subr.mxu0 0.0
      %260 = vmatpush1.msra.mxu0 0.0
      %261 = vmatprep.subr.mxu0 0.0
      %262 = vmatpush1.msra.mxu0 0.0
      %263 = vmatprep.subr.mxu0 0.0
      %264 = vmatpush1.msra.mxu0 0.0
      %265 = vmatprep.subr.mxu0 0.0
      %266 = vmatpush1.msra.mxu0 0.0
      %267 = vmatprep.subr.mxu0 0.0
      %268 = vmatpush1.msra.mxu0 0.0
      %269 = vmatprep.subr.mxu0 0.0
      %270 = vmatpush1.msra.mxu0 0.0
      %271 = vmatprep.subr.mxu0 0.0
      %272 = vmatpush1.msra.mxu0 0.0
      %273 = vmatprep.subr.mxu0 0.0
      %274 = vmatpush1.msra.mxu0 0.0
      %275 = vmatprep.subr.mxu0 0.0
      %276 = vmatpush1.msra.mxu0 0.0
      %277 = vmatprep.subr.mxu0 0.0
      %278 = vmatpush1.msra.mxu0 0.0
      %279 = vmatprep.subr.mxu0 0.0
      %280 = vmatpush1.msra.mxu0 0.0
      %281 = vmatprep.subr.mxu0 0.0
      %282 = vmatpush1.msra.mxu0 0.0
      %283 = vmatprep.subr.mxu0 0.0
      %284 = vmatpush1.msra.mxu0 0.0
      %285 = vmatprep.subr.mxu0 0.0
      %286 = vmatpush1.msra.mxu0 %v253
      %287 = vmatprep.subr.mxu0 0.0
      %288 = vmatpush2.msra.mxu0 0.0
      %289 = vmatprep.subr.mxu0 0.0
      %290 = vmatpush2.msra.mxu0 0.0
      %291 = vmatprep.subr.mxu0 0.0
      %292 = vmatpush2.msra.mxu0 0.0
      %293 = vmatprep.subr.mxu0 0.0
      %294 = vmatpush2.msra.mxu0 0.0
      %295 = vmatprep.subr.mxu0 0.0
      %296 = vmatpush2.msra.mxu0 0.0
      %297 = vmatprep.subr.mxu0 0.0
      %298 = vmatpush2.msra.mxu0 0.0
      %299 = vmatprep.subr.mxu0 0.0
      %300 = vmatpush2.msra.mxu0 0.0
      %301 = vmatprep.subr.mxu0 0.0
      %302 = vmatpush2.msra.mxu0 0.0
      %303 = vmatprep.subr.mxu0 0.0
      %304 = vmatpush2.msra.mxu0 0.0
      %305 = vmatprep.subr.mxu0 0.0
      %306 = vmatpush2.msra.mxu0 0.0
      %307 = vmatprep.subr.mxu0 0.0
      %308 = vmatpush2.msra.mxu0 0.0
      %309 = vmatprep.subr.mxu0 0.0
      %310 = vmatpush2.msra.mxu0 0.0
      %311 = vmatprep.subr.mxu0 0.0
      %312 = vmatpush2.msra.mxu0 0.0
      %313 = vmatprep.subr.mxu0 0.0
      %314 = vmatpush2.msra.mxu0 0.0
      %315 = vmatprep.subr.mxu0 0.0
      %316 = vmatpush2.msra.mxu0 0.0
      %317 = vmatprep.subr.mxu0 0.0
      %318 = vmatpush2.msra.mxu0 0.0
      %319 = vmatprep.mubr.f32.mxu0 0.0
      %320 = vmatmul.mubr.f32.gmra.mxu0 %v204
      %v321 = vpop.f32.mrf.mxu0
      %v322 = vadd.f32 0.0, %v321
      %v323 = vpop.f32.mrf.mxu0
      %324 = vmatprep.mubr.f32.mxu0 0.0
      %325 = vmatmul.mubr.f32.gmra.mxu0 %v207
      %v326 = vpop.f32.mrf.mxu0
      %v327 = vadd.f32 0.0, %v326
      %v328 = vpop.f32.mrf.mxu0
      %329 = vmatprep.mubr.f32.mxu0 0.0
      %330 = vmatmul.mubr.f32.gmra.mxu0 %v210
      %v331 = vpop.f32.mrf.mxu0
      %v332 = vadd.f32 0.0, %v331
      %v333 = vpop.f32.mrf.mxu0
      %334 = vmatprep.mubr.f32.mxu0 0.0
      %335 = vmatmul.mubr.f32.gmra.mxu0 %v213
      %v336 = vpop.f32.mrf.mxu0
      %v337 = vadd.f32 0.0, %v336
      %v338 = vpop.f32.mrf.mxu0
      %339 = vmatprep.mubr.f32.mxu0 0.0
      %340 = vmatmul.mubr.f32.gmra.mxu0 %v216
      %v341 = vpop.f32.mrf.mxu0
      %v342 = vadd.f32 0.0, %v341
      %v343 = vpop.f32.mrf.mxu0
      %344 = vmatprep.mubr.f32.mxu0 0.0
      %345 = vmatmul.mubr.f32.gmra.mxu0 %v219
      %v346 = vpop.f32.mrf.mxu0
      %v347 = vadd.f32 0.0, %v346
      %v348 = vpop.f32.mrf.mxu0
      %349 = vmatprep.mubr.f32.mxu0 0.0
      %350 = vmatmul.mubr.f32.gmra.mxu0 %v222
      %v351 = vpop.f32.mrf.mxu0
      %v352 = vadd.f32 0.0, %v351
      %v353 = vpop.f32.mrf.mxu0
      %354 = vmatprep.mubr.f32.mxu0 0.0
      %355 = vmatmul.mubr.f32.gmra.mxu0 %v225
      %v356 = vpop.f32.mrf.mxu0
      %v357 = vadd.f32 0.0, %v356
      %v358 = vpop.f32.mrf.mxu0
      %359 = vmatprep.mubr.f32.mxu0 0.0
      %360 = vmatmul.mubr.f32.gmra.mxu0 %v228
      %v361 = vpop.f32.mrf.mxu0
      %v362 = vadd.f32 0.0, %v361
      %v363 = vpop.f32.mrf.mxu0
      %364 = vmatprep.mubr.f32.mxu0 0.0
      %365 = vmatmul.mubr.f32.gmra.mxu0 %v231
      %v366 = vpop.f32.mrf.mxu0
      %v367 = vadd.f32 0.0, %v366
      %v368 = vpop.f32.mrf.mxu0
      %369 = vmatprep.mubr.f32.mxu0 0.0
      %370 = vmatmul.mubr.f32.gmra.mxu0 %v234
      %v371 = vpop.f32.mrf.mxu0
      %v372 = vadd.f32 0.0, %v371
      %v373 = vpop.f32.mrf.mxu0
      %374 = vmatprep.mubr.f32.mxu0 0.0
      %375 = vmatmul.mubr.f32.gmra.mxu0 %v237
      %v376 = vpop.f32.mrf.mxu0
      %v377 = vadd.f32 0.0, %v376
      %v378 = vpop.f32.mrf.mxu0
      %379 = vmatprep.mubr.f32.mxu0 0.0
      %380 = vmatmul.mubr.f32.gmra.mxu0 %v240
      %v381 = vpop.f32.mrf.mxu0
      %v382 = vadd.f32 0.0, %v381
      %v383 = vpop.f32.mrf.mxu0
      %384 = vmatprep.mubr.f32.mxu0 0.0
      %385 = vmatmul.mubr.f32.gmra.mxu0 %v243
      %v386 = vpop.f32.mrf.mxu0
      %v387 = vadd.f32 0.0, %v386
      %v388 = vpop.f32.mrf.mxu0
      %389 = vmatprep.mubr.f32.mxu0 0.0
      %390 = vmatmul.mubr.f32.gmra.mxu0 %v246
      %v391 = vpop.f32.mrf.mxu0
      %v392 = vadd.f32 0.0, %v391
      %v393 = vpop.f32.mrf.mxu0
      %394 = vmatprep.mubr.f32.mxu0 0.0
      %395 = vmatmul.mubr.f32.gmra.mxu0 %v249
      %v396 = vpop.f32.mrf.mxu0
      %v397 = vadd.f32 0.0, %v396
      %v398 = vpop.f32.mrf.mxu0
      %399 = vdwg.mxu0
      %400 = vst.msk [vmem:[%s179] sm:$0xff] %vm202, %v322
      %401 = vst.msk [vmem:[%s179 + $0x8] sm:$0xff] %vm202, %v327
      %402 = vst.msk [vmem:[%s179 + $0x10] sm:$0xff] %vm202, %v332
      %403 = vst.msk [vmem:[%s179 + $0x18] sm:$0xff] %vm202, %v337
      %404 = vst.msk [vmem:[%s179 + $0x20] sm:$0xff] %vm202, %v342
      %405 = vst.msk [vmem:[%s179 + $0x28] sm:$0xff] %vm202, %v347
      %406 = vst.msk [vmem:[%s179 + $0x30] sm:$0xff] %vm202, %v352
      %407 = vst.msk [vmem:[%s179 + $0x38] sm:$0xff] %vm202, %v357
      %408 = vst.msk [vmem:[%s179 + $0x40] sm:$0xff] %vm202, %v362
      %409 = vst.msk [vmem:[%s179 + $0x48] sm:$0xff] %vm202, %v367
      %410 = vst.msk [vmem:[%s179 + $0x50] sm:$0xff] %vm202, %v372
      %411 = vst.msk [vmem:[%s179 + $0x58] sm:$0xff] %vm202, %v377
      %412 = vst.msk [vmem:[%s179 + $0x60] sm:$0xff] %vm202, %v382
      %413 = vst.msk [vmem:[%s179 + $0x68] sm:$0xff] %vm202, %v387
      %414 = vst.msk [vmem:[%s179 + $0x70] sm:$0xff] %vm202, %v392
      %415 = vst.msk [vmem:[%s179 + $0x78] sm:$0xff] %vm202, %v397
      %v416 = vsel %vm202, %v322, 0.0
      %v417 = vsel %vm202, %v327, 0.0
      %v418 = vadd.f32 %v416, %v417
      %v419 = vsel %vm202, %v332, 0.0
      %v420 = vadd.f32 %v418, %v419
      %v421 = vsel %vm202, %v337, 0.0
      %v422 = vadd.f32 %v420, %v421
      %v423 = vsel %vm202, %v342, 0.0
      %v424 = vadd.f32 %v422, %v423
      %v425 = vsel %vm202, %v347, 0.0
      %v426 = vadd.f32 %v424, %v425
      %v427 = vsel %vm202, %v352, 0.0
      %v428 = vadd.f32 %v426, %v427
      %v429 = vsel %vm202, %v357, 0.0
      %v430 = vadd.f32 %v428, %v429
      %v431 = vsel %vm202, %v362, 0.0
      %v432 = vadd.f32 %v430, %v431
      %v433 = vsel %vm202, %v367, 0.0
      %v434 = vadd.f32 %v432, %v433
      %v435 = vsel %vm202, %v372, 0.0
      %v436 = vadd.f32 %v434, %v435
      %v437 = vsel %vm202, %v377, 0.0
      %v438 = vadd.f32 %v436, %v437
      %v439 = vsel %vm202, %v382, 0.0
      %v440 = vadd.f32 %v438, %v439
      %v441 = vsel %vm202, %v387, 0.0
      %v442 = vadd.f32 %v440, %v441
      %v443 = vsel %vm202, %v392, 0.0
      %v444 = vadd.f32 %v442, %v443
      %v445 = vsel %vm202, %v397, 0.0
      %v446 = vadd.f32 %v444, %v445
      %v447 = vrot.slane %v446, 4
      %v448 = vadd.f32 %v446, %v447
      %v449 = vrot.slane %v448, 2
      %v450 = vadd.f32 %v448, %v449
      %v451 = vrot.slane %v450, 1
      %v452 = vadd.f32 %v450, %v451
      %v453 = vmul.f32 %v322, %v322
      %v454 = vmul.f32 %v327, %v327
      %v455 = vmul.f32 %v332, %v332
      %v456 = vmul.f32 %v337, %v337
      %v457 = vmul.f32 %v342, %v342
      %v458 = vmul.f32 %v347, %v347
      %v459 = vmul.f32 %v352, %v352
      %v460 = vmul.f32 %v357, %v357
      %v461 = vmul.f32 %v362, %v362
      %v462 = vmul.f32 %v367, %v367
      %v463 = vmul.f32 %v372, %v372
      %v464 = vmul.f32 %v377, %v377
      %v465 = vmul.f32 %v382, %v382
      %v466 = vmul.f32 %v387, %v387
      %v467 = vmul.f32 %v392, %v392
      %v468 = vmul.f32 %v397, %v397
      %v469 = vsel %vm202, %v453, 0.0
      %v470 = vsel %vm202, %v454, 0.0
      %v471 = vadd.f32 %v469, %v470
      %v472 = vsel %vm202, %v455, 0.0
      %v473 = vadd.f32 %v471, %v472
      %v474 = vsel %vm202, %v456, 0.0
      %v475 = vadd.f32 %v473, %v474
      %v476 = vsel %vm202, %v457, 0.0
      %v477 = vadd.f32 %v475, %v476
      %v478 = vsel %vm202, %v458, 0.0
      %v479 = vadd.f32 %v477, %v478
      %v480 = vsel %vm202, %v459, 0.0
      %v481 = vadd.f32 %v479, %v480
      %v482 = vsel %vm202, %v460, 0.0
      %v483 = vadd.f32 %v481, %v482
      %v484 = vsel %vm202, %v461, 0.0
      %v485 = vadd.f32 %v483, %v484
      %v486 = vsel %vm202, %v462, 0.0
      %v487 = vadd.f32 %v485, %v486
      %v488 = vsel %vm202, %v463, 0.0
      %v489 = vadd.f32 %v487, %v488
      %v490 = vsel %vm202, %v464, 0.0
      %v491 = vadd.f32 %v489, %v490
      %v492 = vsel %vm202, %v465, 0.0
      %v493 = vadd.f32 %v491, %v492
      %v494 = vsel %vm202, %v466, 0.0
      %v495 = vadd.f32 %v493, %v494
      %v496 = vsel %vm202, %v467, 0.0
      %v497 = vadd.f32 %v495, %v496
      %v498 = vsel %vm202, %v468, 0.0
      %v499 = vadd.f32 %v497, %v498
      %v500 = vrot.slane %v499, 4
      %v501 = vadd.f32 %v499, %v500
      %v502 = vrot.slane %v501, 2
      %v503 = vadd.f32 %v501, %v502
      %v504 = vrot.slane %v503, 1
      %v505 = vadd.f32 %v503, %v504
      %vm506 = vcmask 1040384
      %v507 = vsel %vm506, %v452, %v505
      %vm508 = vcmask 25600
      %509 = vst.msk [vmem:[%s184] sm:$0x3] %vm508, %v507
      %s510 = smul.u32 16, %s15
      %p511 = scmp.lt.s32.totalorder %s510, 63
      %s512 = scalar_select %p511, %s510, 63
      %s513 = smul.addr %s512, 8
      %s514 = scalar_lea.vmem %s2, %s513
      %p515 = scmp.lt.s32.totalorder %s15, 3
      %s516 = scalar_select %p515, %s15, 3
      %s517 = smul.addr %s516, 2
      %s518 = scalar_lea.vmem %s3, %s517
      // Predicated region
      $region29: #{bottleneck_forward.6} parent=27 // pred_check
        %p519 = pneg %p80
      $region30: #{bottleneck_forward.6} parent=27 // pred_check_branch
        %521 = sbr.rel (%p519) target = $region32
      $region31: #{bottleneck_forward.6} parent=27 // pred_region
        %s522 = smul.u32 16, %s15
      $region32: #{bottleneck_forward.6} parent=27 // pred_fallthru
        _
      // Predicated region
      $region33: #{bottleneck_forward.6} parent=27 // pred_check
        %p523 = pneg %p106
      $region34: #{bottleneck_forward.6} parent=27 // pred_check_branch
        %525 = sbr.rel (%p523) target = $region36
      $region35: #{bottleneck_forward.6} parent=27 // pred_region
        _
      $region36: #{bottleneck_forward.6} parent=27 // pred_fallthru
        _
    $region28: #{bottleneck_forward.6} parent=5 // pred_fallthru
      _
    %p526 = scmp.le.s32.totalorder 2, %s10
    // Predicated region
    $region37: #{bottleneck_forward.6} parent=5 // pred_check
      %p527 = pneg %p526
    $region38: #{bottleneck_forward.6} parent=5 // pred_check_branch
      %529 = sbr.rel (%p527) target = $region40
    $region39: #{bottleneck_forward.6} parent=5 // pred_region
      %s530 = ssub.s32 %s10, 2
      // Predicated region
      $region41: #{bottleneck_forward.6} parent=39 // pred_check
        %p531 = pneg %p86
      $region42: #{bottleneck_forward.6} parent=39 // pred_check_branch
        %533 = sbr.rel (%p531) target = $region44
      $region43: #{bottleneck_forward.6} parent=39 // pred_region
        %s534 = smul.u32 16, %s16
        %p535 = scmp.lt.s32.totalorder %s534, 63
        %s536 = scalar_select %p535, %s534, 63
        %s537 = smul.addr %s536, 8
        %s538 = scalar_lea.vmem %s2, %s537
      $region44: #{bottleneck_forward.6} parent=39 // pred_fallthru
        _
      // Predicated region
      $region45: #{bottleneck_forward.6} parent=39 // pred_check
        %p539 = pneg %p112
      $region46: #{bottleneck_forward.6} parent=39 // pred_check_branch
        %541 = sbr.rel (%p539) target = $region48
      $region47: #{bottleneck_forward.6} parent=39 // pred_region
        %p542 = scmp.lt.s32.totalorder %s16, 3
        %s543 = scalar_select %p542, %s16, 3
        %s544 = smul.addr %s543, 2
        %s545 = scalar_lea.vmem %s3, %s544
      $region48: #{bottleneck_forward.6} parent=39 // pred_fallthru
        _
    $region40: #{bottleneck_forward.6} parent=5 // pred_fallthru
      _
  $region6: #{bottleneck_forward.6} parent=0 // loop_footer
    %s14 = sadd.s32 1, %s10
  $region7: #{bottleneck_forward.6} parent=0 // loop_footer_branch
    %9 = sbr.rel target = $region3
  $region8: #{bottleneck_forward.6} parent=0 // loop_exit
    _

// kernel: bottleneck_forward.10
$region0: #{bottleneck_forward.10}
  #allocation0 [shape = 'u32[]', space=smem, size = 0x4, offset = 0x4, fixed_abs, tag = 'smem constant byte address 0x4 - core index']
  #allocation1 [shape = 'u32[144,128]{1,0:T(1,128)}', space=vmem, size = 0x12000, scoped, tag = 'internal scratch']
  %s0 = inlined_call_operand.vmem [shape: f32[128,4], index: 0, kind: input, shape index: {}]
  %s1 = inlined_call_operand.vmem [shape: f32[1,4], index: 1, kind: input, shape index: {}]
  %s2 = inlined_call_operand.vmem [shape: f32[1,4], index: 2, kind: input, shape index: {}]
  %s3 = inlined_call_operand.vmem [shape: f32[4,16], index: 3, kind: input, shape index: {}]
  %s4 = inlined_call_operand.vmem [shape: f32[128,16], index: 4, kind: output, shape index: {0}]
  %s5 = inlined_call_operand.vmem [shape: f32[1,2,16], index: 5, kind: output, shape index: {1}]
  %6 = xla_tuple %s4, %s5
  %s7 = sld [smem:[#allocation0]]
  $region34: #{bottleneck_forward.10} parent=0
    _
  %s9 = ssub.s32 1, %s7
  %s10 = scalar_select 0, %s9, %s7
  // Predicated region
  $region2: #{bottleneck_forward.10} parent=0 // pred_check
    _
  $region3: #{bottleneck_forward.10} parent=0 // pred_check_branch
    %12 = sbr.rel (0) target = $region5
  $region4: #{bottleneck_forward.10} parent=0 // pred_region
    _
  $region5: #{bottleneck_forward.10} parent=0 // pred_fallthru
    _
  // Predicated region
  $region6: #{bottleneck_forward.10} parent=0 // pred_check
    _
  $region7: #{bottleneck_forward.10} parent=0 // pred_check_branch
    %14 = sbr.rel (0) target = $region9
  $region8: #{bottleneck_forward.10} parent=0 // pred_region
    _
  $region9: #{bottleneck_forward.10} parent=0 // pred_fallthru
    _
  // Predicated region
  $region10: #{bottleneck_forward.10} parent=0 // pred_check
    _
  $region11: #{bottleneck_forward.10} parent=0 // pred_check_branch
    %16 = sbr.rel (0) target = $region13
  $region12: #{bottleneck_forward.10} parent=0 // pred_region
    _
  $region13: #{bottleneck_forward.10} parent=0 // pred_fallthru
    _
  // Predicated region
  $region14: #{bottleneck_forward.10} parent=0 // pred_check
    _
  $region15: #{bottleneck_forward.10} parent=0 // pred_check_branch
    %18 = sbr.rel (0) target = $region17
  $region16: #{bottleneck_forward.10} parent=0 // pred_region
    _
  $region17: #{bottleneck_forward.10} parent=0 // pred_fallthru
    _
  %v19 = vld [vmem:[%s0] sm:$0xff]
  %v20 = vld [vmem:[%s0 + $0x8] sm:$0xff]
  %v21 = vld [vmem:[%s0 + $0x10] sm:$0xff]
  %v22 = vld [vmem:[%s0 + $0x18] sm:$0xff]
  %v23 = vld [vmem:[%s0 + $0x20] sm:$0xff]
  %v24 = vld [vmem:[%s0 + $0x28] sm:$0xff]
  %v25 = vld [vmem:[%s0 + $0x30] sm:$0xff]
  %v26 = vld [vmem:[%s0 + $0x38] sm:$0xff]
  %v27 = vld [vmem:[%s0 + $0x40] sm:$0xff]
  %v28 = vld [vmem:[%s0 + $0x48] sm:$0xff]
  %v29 = vld [vmem:[%s0 + $0x50] sm:$0xff]
  %v30 = vld [vmem:[%s0 + $0x58] sm:$0xff]
  %v31 = vld [vmem:[%s0 + $0x60] sm:$0xff]
  %v32 = vld [vmem:[%s0 + $0x68] sm:$0xff]
  %v33 = vld [vmem:[%s0 + $0x70] sm:$0xff]
  %v34 = vld [vmem:[%s0 + $0x78] sm:$0xff]
  %v35 = vld [vmem:[%s1] sm:$0x1]
  %v37 = vlaneseq
  %v38 = vshrl.u32 %v37, 7
  %v39 = vsub.s32 0, %v38
  %v40 = vrot.slane %v35, %v39
  %v42 = vmul.f32 %v19, %v40
  %v43 = vmul.f32 %v20, %v40
  %v44 = vmul.f32 %v21, %v40
  %v45 = vmul.f32 %v22, %v40
  %v46 = vmul.f32 %v23, %v40
  %v47 = vmul.f32 %v24, %v40
  %v48 = vmul.f32 %v25, %v40
  %v49 = vmul.f32 %v26, %v40
  %v50 = vmul.f32 %v27, %v40
  %v51 = vmul.f32 %v28, %v40
  %v52 = vmul.f32 %v29, %v40
  %v53 = vmul.f32 %v30, %v40
  %v54 = vmul.f32 %v31, %v40
  %v55 = vmul.f32 %v32, %v40
  %v56 = vmul.f32 %v33, %v40
  %v57 = vmul.f32 %v34, %v40
  %v58 = vld [vmem:[%s2] sm:$0x1]
  %v60 = vlaneseq
  %v61 = vshrl.u32 %v60, 7
  %v62 = vsub.s32 0, %v61
  %v63 = vrot.slane %v58, %v62
  %v65 = vadd.f32 %v42, %v63
  %v66 = vadd.f32 %v43, %v63
  %v67 = vadd.f32 %v44, %v63
  %v68 = vadd.f32 %v45, %v63
  %v69 = vadd.f32 %v46, %v63
  %v70 = vadd.f32 %v47, %v63
  %v71 = vadd.f32 %v48, %v63
  %v72 = vadd.f32 %v49, %v63
  %v73 = vadd.f32 %v50, %v63
  %v74 = vadd.f32 %v51, %v63
  %v75 = vadd.f32 %v52, %v63
  %v76 = vadd.f32 %v53, %v63
  %v77 = vadd.f32 %v54, %v63
  %v78 = vadd.f32 %v55, %v63
  %v79 = vadd.f32 %v56, %v63
  %v80 = vadd.f32 %v57, %v63
  %v81 = vmax.f32 %v65, 0.0
  %v82 = vmax.f32 %v66, 0.0
  %v83 = vmax.f32 %v67, 0.0
  %v84 = vmax.f32 %v68, 0.0
  %v85 = vmax.f32 %v69, 0.0
  %v86 = vmax.f32 %v70, 0.0
  %v87 = vmax.f32 %v71, 0.0
  %v88 = vmax.f32 %v72, 0.0
  %v89 = vmax.f32 %v73, 0.0
  %v90 = vmax.f32 %v74, 0.0
  %v91 = vmax.f32 %v75, 0.0
  %v92 = vmax.f32 %v76, 0.0
  %v93 = vmax.f32 %v77, 0.0
  %v94 = vmax.f32 %v78, 0.0
  %v95 = vmax.f32 %v79, 0.0
  %v96 = vmax.f32 %v80, 0.0
  %v97 = vld [vmem:[%s3] sm:$0xf]
  %vm98 = vcmask 31744
  %v100 = vsel %vm98, %v81, 0
  %v103 = vsel %vm98, %v82, 0
  %v106 = vsel %vm98, %v83, 0
  %v109 = vsel %vm98, %v84, 0
  %v112 = vsel %vm98, %v85, 0
  %v115 = vsel %vm98, %v86, 0
  %v118 = vsel %vm98, %v87, 0
  %v121 = vsel %vm98, %v88, 0
  %v124 = vsel %vm98, %v89, 0
  %v127 = vsel %vm98, %v90, 0
  %v130 = vsel %vm98, %v91, 0
  %v133 = vsel %vm98, %v92, 0
  %v136 = vsel %vm98, %v93, 0
  %v139 = vsel %vm98, %v94, 0
  %v142 = vsel %vm98, %v95, 0
  %v145 = vsel %vm98, %v96, 0
  %vm147 = vcmask 1043456
  %v149 = vsel %vm147, %v97, 0
  %151 = vmatprep.subr.mxu0 0.0
  %152 = vmatpush1.msra.mxu0 0.0
  %153 = vmatprep.subr.mxu0 0.0
  %154 = vmatpush1.msra.mxu0 0.0
  %155 = vmatprep.subr.mxu0 0.0
  %156 = vmatpush1.msra.mxu0 0.0
  %157 = vmatprep.subr.mxu0 0.0
  %158 = vmatpush1.msra.mxu0 0.0
  %159 = vmatprep.subr.mxu0 0.0
  %160 = vmatpush1.msra.mxu0 0.0
  %161 = vmatprep.subr.mxu0 0.0
  %162 = vmatpush1.msra.mxu0 0.0
  %163 = vmatprep.subr.mxu0 0.0
  %164 = vmatpush1.msra.mxu0 0.0
  %165 = vmatprep.subr.mxu0 0.0
  %166 = vmatpush1.msra.mxu0 0.0
  %167 = vmatprep.subr.mxu0 0.0
  %168 = vmatpush1.msra.mxu0 0.0
  %169 = vmatprep.subr.mxu0 0.0
  %170 = vmatpush1.msra.mxu0 0.0
  %171 = vmatprep.subr.mxu0 0.0
  %172 = vmatpush1.msra.mxu0 0.0
  %173 = vmatprep.subr.mxu0 0.0
  %174 = vmatpush1.msra.mxu0 0.0
  %175 = vmatprep.subr.mxu0 0.0
  %176 = vmatpush1.msra.mxu0 0.0
  %177 = vmatprep.subr.mxu0 0.0
  %178 = vmatpush1.msra.mxu0 0.0
  %179 = vmatprep.subr.mxu0 0.0
  %180 = vmatpush1.msra.mxu0 0.0
  %181 = vmatprep.subr.mxu0 0.0
  %182 = vmatpush1.msra.mxu0 %v149
  %183 = vmatprep.subr.mxu0 0.0
  %184 = vmatpush2.msra.mxu0 0.0
  %185 = vmatprep.subr.mxu0 0.0
  %186 = vmatpush2.msra.mxu0 0.0
  %187 = vmatprep.subr.mxu0 0.0
  %188 = vmatpush2.msra.mxu0 0.0
  %189 = vmatprep.subr.mxu0 0.0
  %190 = vmatpush2.msra.mxu0 0.0
  %191 = vmatprep.subr.mxu0 0.0
  %192 = vmatpush2.msra.mxu0 0.0
  %193 = vmatprep.subr.mxu0 0.0
  %194 = vmatpush2.msra.mxu0 0.0
  %195 = vmatprep.subr.mxu0 0.0
  %196 = vmatpush2.msra.mxu0 0.0
  %197 = vmatprep.subr.mxu0 0.0
  %198 = vmatpush2.msra.mxu0 0.0
  %199 = vmatprep.subr.mxu0 0.0
  %200 = vmatpush2.msra.mxu0 0.0
  %201 = vmatprep.subr.mxu0 0.0
  %202 = vmatpush2.msra.mxu0 0.0
  %203 = vmatprep.subr.mxu0 0.0
  %204 = vmatpush2.msra.mxu0 0.0
  %205 = vmatprep.subr.mxu0 0.0
  %206 = vmatpush2.msra.mxu0 0.0
  %207 = vmatprep.subr.mxu0 0.0
  %208 = vmatpush2.msra.mxu0 0.0
  %209 = vmatprep.subr.mxu0 0.0
  %210 = vmatpush2.msra.mxu0 0.0
  %211 = vmatprep.subr.mxu0 0.0
  %212 = vmatpush2.msra.mxu0 0.0
  %213 = vmatprep.subr.mxu0 0.0
  %214 = vmatpush2.msra.mxu0 0.0
  %215 = vmatprep.mubr.f32.mxu0 0.0
  %216 = vmatmul.mubr.f32.gmra.mxu0 %v100
  %v217 = vpop.f32.mrf.mxu0
  %v218 = vadd.f32 0.0, %v217
  %v219 = vpop.f32.mrf.mxu0
  %220 = vmatprep.mubr.f32.mxu0 0.0
  %221 = vmatmul.mubr.f32.gmra.mxu0 %v103
  %v222 = vpop.f32.mrf.mxu0
  %v223 = vadd.f32 0.0, %v222
  %v224 = vpop.f32.mrf.mxu0
  %225 = vmatprep.mubr.f32.mxu0 0.0
  %226 = vmatmul.mubr.f32.gmra.mxu0 %v106
  %v227 = vpop.f32.mrf.mxu0
  %v228 = vadd.f32 0.0, %v227
  %v229 = vpop.f32.mrf.mxu0
  %230 = vmatprep.mubr.f32.mxu0 0.0
  %231 = vmatmul.mubr.f32.gmra.mxu0 %v109
  %v232 = vpop.f32.mrf.mxu0
  %v233 = vadd.f32 0.0, %v232
  %v234 = vpop.f32.mrf.mxu0
  %235 = vmatprep.mubr.f32.mxu0 0.0
  %236 = vmatmul.mubr.f32.gmra.mxu0 %v112
  %v237 = vpop.f32.mrf.mxu0
  %v238 = vadd.f32 0.0, %v237
  %v239 = vpop.f32.mrf.mxu0
  %240 = vmatprep.mubr.f32.mxu0 0.0
  %241 = vmatmul.mubr.f32.gmra.mxu0 %v115
  %v242 = vpop.f32.mrf.mxu0
  %v243 = vadd.f32 0.0, %v242
  %v244 = vpop.f32.mrf.mxu0
  %245 = vmatprep.mubr.f32.mxu0 0.0
  %246 = vmatmul.mubr.f32.gmra.mxu0 %v118
  %v247 = vpop.f32.mrf.mxu0
  %v248 = vadd.f32 0.0, %v247
  %v249 = vpop.f32.mrf.mxu0
  %250 = vmatprep.mubr.f32.mxu0 0.0
  %251 = vmatmul.mubr.f32.gmra.mxu0 %v121
  %v252 = vpop.f32.mrf.mxu0
  %v253 = vadd.f32 0.0, %v252
  %v254 = vpop.f32.mrf.mxu0
  %255 = vmatprep.mubr.f32.mxu0 0.0
  %256 = vmatmul.mubr.f32.gmra.mxu0 %v124
  %v257 = vpop.f32.mrf.mxu0
  %v258 = vadd.f32 0.0, %v257
  %v259 = vpop.f32.mrf.mxu0
  %260 = vmatprep.mubr.f32.mxu0 0.0
  %261 = vmatmul.mubr.f32.gmra.mxu0 %v127
  %v262 = vpop.f32.mrf.mxu0
  %v263 = vadd.f32 0.0, %v262
  %v264 = vpop.f32.mrf.mxu0
  %265 = vmatprep.mubr.f32.mxu0 0.0
  %266 = vmatmul.mubr.f32.gmra.mxu0 %v130
  %v267 = vpop.f32.mrf.mxu0
  %v268 = vadd.f32 0.0, %v267
  %v269 = vpop.f32.mrf.mxu0
  %270 = vmatprep.mubr.f32.mxu0 0.0
  %271 = vmatmul.mubr.f32.gmra.mxu0 %v133
  %v272 = vpop.f32.mrf.mxu0
  %v273 = vadd.f32 0.0, %v272
  %v274 = vpop.f32.mrf.mxu0
  %275 = vmatprep.mubr.f32.mxu0 0.0
  %276 = vmatmul.mubr.f32.gmra.mxu0 %v136
  %v277 = vpop.f32.mrf.mxu0
  %v278 = vadd.f32 0.0, %v277
  %v279 = vpop.f32.mrf.mxu0
  %280 = vmatprep.mubr.f32.mxu0 0.0
  %281 = vmatmul.mubr.f32.gmra.mxu0 %v139
  %v282 = vpop.f32.mrf.mxu0
  %v283 = vadd.f32 0.0, %v282
  %v284 = vpop.f32.mrf.mxu0
  %285 = vmatprep.mubr.f32.mxu0 0.0
  %286 = vmatmul.mubr.f32.gmra.mxu0 %v142
  %v287 = vpop.f32.mrf.mxu0
  %v288 = vadd.f32 0.0, %v287
  %v289 = vpop.f32.mrf.mxu0
  %290 = vmatprep.mubr.f32.mxu0 0.0
  %291 = vmatmul.mubr.f32.gmra.mxu0 %v145
  %v292 = vpop.f32.mrf.mxu0
  %v293 = vadd.f32 0.0, %v292
  %v294 = vpop.f32.mrf.mxu0
  %295 = vdwg.mxu0
  %vm296 = vcmask 130048
  %297 = vst.msk [vmem:[%s4] sm:$0xff] %vm296, %v218
  %298 = vst.msk [vmem:[%s4 + $0x8] sm:$0xff] %vm296, %v223
  %299 = vst.msk [vmem:[%s4 + $0x10] sm:$0xff] %vm296, %v228
  %300 = vst.msk [vmem:[%s4 + $0x18] sm:$0xff] %vm296, %v233
  %301 = vst.msk [vmem:[%s4 + $0x20] sm:$0xff] %vm296, %v238
  %302 = vst.msk [vmem:[%s4 + $0x28] sm:$0xff] %vm296, %v243
  %303 = vst.msk [vmem:[%s4 + $0x30] sm:$0xff] %vm296, %v248
  %304 = vst.msk [vmem:[%s4 + $0x38] sm:$0xff] %vm296, %v253
  %305 = vst.msk [vmem:[%s4 + $0x40] sm:$0xff] %vm296, %v258
  %306 = vst.msk [vmem:[%s4 + $0x48] sm:$0xff] %vm296, %v263
  %307 = vst.msk [vmem:[%s4 + $0x50] sm:$0xff] %vm296, %v268
  %308 = vst.msk [vmem:[%s4 + $0x58] sm:$0xff] %vm296, %v273
  %309 = vst.msk [vmem:[%s4 + $0x60] sm:$0xff] %vm296, %v278
  %310 = vst.msk [vmem:[%s4 + $0x68] sm:$0xff] %vm296, %v283
  %311 = vst.msk [vmem:[%s4 + $0x70] sm:$0xff] %vm296, %v288
  %312 = vst.msk [vmem:[%s4 + $0x78] sm:$0xff] %vm296, %v293
  %v313 = vsel %vm296, %v218, 0.0
  %v314 = vsel %vm296, %v223, 0.0
  %v315 = vadd.f32 %v313, %v314
  %v316 = vsel %vm296, %v228, 0.0
  %v317 = vadd.f32 %v315, %v316
  %v318 = vsel %vm296, %v233, 0.0
  %v319 = vadd.f32 %v317, %v318
  %v320 = vsel %vm296, %v238, 0.0
  %v321 = vadd.f32 %v319, %v320
  %v322 = vsel %vm296, %v243, 0.0
  %v323 = vadd.f32 %v321, %v322
  %v324 = vsel %vm296, %v248, 0.0
  %v325 = vadd.f32 %v323, %v324
  %v326 = vsel %vm296, %v253, 0.0
  %v327 = vadd.f32 %v325, %v326
  %v328 = vsel %vm296, %v258, 0.0
  %v329 = vadd.f32 %v327, %v328
  %v330 = vsel %vm296, %v263, 0.0
  %v331 = vadd.f32 %v329, %v330
  %v332 = vsel %vm296, %v268, 0.0
  %v333 = vadd.f32 %v331, %v332
  %v334 = vsel %vm296, %v273, 0.0
  %v335 = vadd.f32 %v333, %v334
  %v336 = vsel %vm296, %v278, 0.0
  %v337 = vadd.f32 %v335, %v336
  %v338 = vsel %vm296, %v283, 0.0
  %v339 = vadd.f32 %v337, %v338
  %v340 = vsel %vm296, %v288, 0.0
  %v341 = vadd.f32 %v339, %v340
  %v342 = vsel %vm296, %v293, 0.0
  %v343 = vadd.f32 %v341, %v342
  %v344 = vrot.slane %v343, 4
  %v345 = vadd.f32 %v343, %v344
  %v346 = vrot.slane %v345, 2
  %v347 = vadd.f32 %v345, %v346
  %v348 = vrot.slane %v347, 1
  %v349 = vadd.f32 %v347, %v348
  %v350 = vmul.f32 %v218, %v218
  %v351 = vmul.f32 %v223, %v223
  %v352 = vmul.f32 %v228, %v228
  %v353 = vmul.f32 %v233, %v233
  %v354 = vmul.f32 %v238, %v238
  %v355 = vmul.f32 %v243, %v243
  %v356 = vmul.f32 %v248, %v248
  %v357 = vmul.f32 %v253, %v253
  %v358 = vmul.f32 %v258, %v258
  %v359 = vmul.f32 %v263, %v263
  %v360 = vmul.f32 %v268, %v268
  %v361 = vmul.f32 %v273, %v273
  %v362 = vmul.f32 %v278, %v278
  %v363 = vmul.f32 %v283, %v283
  %v364 = vmul.f32 %v288, %v288
  %v365 = vmul.f32 %v293, %v293
  %v366 = vsel %vm296, %v350, 0.0
  %v367 = vsel %vm296, %v351, 0.0
  %v368 = vadd.f32 %v366, %v367
  %v369 = vsel %vm296, %v352, 0.0
  %v370 = vadd.f32 %v368, %v369
  %v371 = vsel %vm296, %v353, 0.0
  %v372 = vadd.f32 %v370, %v371
  %v373 = vsel %vm296, %v354, 0.0
  %v374 = vadd.f32 %v372, %v373
  %v375 = vsel %vm296, %v355, 0.0
  %v376 = vadd.f32 %v374, %v375
  %v377 = vsel %vm296, %v356, 0.0
  %v378 = vadd.f32 %v376, %v377
  %v379 = vsel %vm296, %v357, 0.0
  %v380 = vadd.f32 %v378, %v379
  %v381 = vsel %vm296, %v358, 0.0
  %v382 = vadd.f32 %v380, %v381
  %v383 = vsel %vm296, %v359, 0.0
  %v384 = vadd.f32 %v382, %v383
  %v385 = vsel %vm296, %v360, 0.0
  %v386 = vadd.f32 %v384, %v385
  %v387 = vsel %vm296, %v361, 0.0
  %v388 = vadd.f32 %v386, %v387
  %v389 = vsel %vm296, %v362, 0.0
  %v390 = vadd.f32 %v388, %v389
  %v391 = vsel %vm296, %v363, 0.0
  %v392 = vadd.f32 %v390, %v391
  %v393 = vsel %vm296, %v364, 0.0
  %v394 = vadd.f32 %v392, %v393
  %v395 = vsel %vm296, %v365, 0.0
  %v396 = vadd.f32 %v394, %v395
  %v397 = vrot.slane %v396, 4
  %v398 = vadd.f32 %v396, %v397
  %v399 = vrot.slane %v398, 2
  %v400 = vadd.f32 %v398, %v399
  %v401 = vrot.slane %v400, 1
  %v402 = vadd.f32 %v400, %v401
  %vm403 = vcmask 1040384
  %v404 = vsel %vm403, %v349, %v402
  %vm405 = vcmask 123904
  %406 = vst.msk [vmem:[%s5] sm:$0x3] %vm405, %v404
  // Predicated region
  $region18: #{bottleneck_forward.10} parent=0 // pred_check
    _
  $region19: #{bottleneck_forward.10} parent=0 // pred_check_branch
    %408 = sbr.rel (0) target = $region21
  $region20: #{bottleneck_forward.10} parent=0 // pred_region
    _
  $region21: #{bottleneck_forward.10} parent=0 // pred_fallthru
    _
  // Predicated region
  $region22: #{bottleneck_forward.10} parent=0 // pred_check
    _
  $region23: #{bottleneck_forward.10} parent=0 // pred_check_branch
    %410 = sbr.rel (0) target = $region25
  $region24: #{bottleneck_forward.10} parent=0 // pred_region
    _
  $region25: #{bottleneck_forward.10} parent=0 // pred_fallthru
    _
  // Predicated region
  $region26: #{bottleneck_forward.10} parent=0 // pred_check
    _
  $region27: #{bottleneck_forward.10} parent=0 // pred_check_branch
    %412 = sbr.rel (0) target = $region29
  $region28: #{bottleneck_forward.10} parent=0 // pred_region
    _
  $region29: #{bottleneck_forward.10} parent=0 // pred_fallthru
    _
  // Predicated region
  $region30: #{bottleneck_forward.10} parent=0 // pred_check
    _
  $region31: #{bottleneck_forward.10} parent=0 // pred_check_branch
    %414 = sbr.rel (0) target = $region33
  $region32: #{bottleneck_forward.10} parent=0 // pred_region
    _
  $region33: #{bottleneck_forward.10} parent=0 // pred_fallthru
    _

// kernel: bottleneck_forward.8
$region0: #{bottleneck_forward.8}
  #allocation0 [shape = 'u32[]', space=smem, size = 0x4, offset = 0x4, fixed_abs, tag = 'smem constant byte address 0x4 - core index']
  #allocation1 [shape = 'u32[144,128]{1,0:T(1,128)}', space=vmem, size = 0x12000, scoped, tag = 'internal scratch']
  %s0 = inlined_call_operand.vmem [shape: f32[128,36], index: 0, kind: input, shape index: {}]
  %s1 = inlined_call_operand.vmem [shape: f32[36,4], index: 1, kind: input, shape index: {}]
  %s2 = inlined_call_operand.vmem [shape: f32[128,4], index: 2, kind: output, shape index: {0}]
  %s3 = inlined_call_operand.vmem [shape: f32[1,2,4], index: 3, kind: output, shape index: {1}]
  %4 = xla_tuple %s2, %s3
  %s5 = sld [smem:[#allocation0]]
  $region26: #{bottleneck_forward.8} parent=0
    _
  %s7 = ssub.s32 1, %s5
  %s8 = scalar_select 0, %s7, %s5
  // Predicated region
  $region2: #{bottleneck_forward.8} parent=0 // pred_check
    _
  $region3: #{bottleneck_forward.8} parent=0 // pred_check_branch
    %10 = sbr.rel (0) target = $region5
  $region4: #{bottleneck_forward.8} parent=0 // pred_region
    _
  $region5: #{bottleneck_forward.8} parent=0 // pred_fallthru
    _
  // Predicated region
  $region6: #{bottleneck_forward.8} parent=0 // pred_check
    _
  $region7: #{bottleneck_forward.8} parent=0 // pred_check_branch
    %12 = sbr.rel (0) target = $region9
  $region8: #{bottleneck_forward.8} parent=0 // pred_region
    _
  $region9: #{bottleneck_forward.8} parent=0 // pred_fallthru
    _
  %v13 = vld [vmem:[%s0] sm:$0xff]
  %v14 = vld [vmem:[%s0 + $0x8] sm:$0xff]
  %v15 = vld [vmem:[%s0 + $0x10] sm:$0xff]
  %v16 = vld [vmem:[%s0 + $0x18] sm:$0xff]
  %v17 = vld [vmem:[%s0 + $0x20] sm:$0xff]
  %v18 = vld [vmem:[%s0 + $0x28] sm:$0xff]
  %v19 = vld [vmem:[%s0 + $0x30] sm:$0xff]
  %v20 = vld [vmem:[%s0 + $0x38] sm:$0xff]
  %v21 = vld [vmem:[%s0 + $0x40] sm:$0xff]
  %v22 = vld [vmem:[%s0 + $0x48] sm:$0xff]
  %v23 = vld [vmem:[%s0 + $0x50] sm:$0xff]
  %v24 = vld [vmem:[%s0 + $0x58] sm:$0xff]
  %v25 = vld [vmem:[%s0 + $0x60] sm:$0xff]
  %v26 = vld [vmem:[%s0 + $0x68] sm:$0xff]
  %v27 = vld [vmem:[%s0 + $0x70] sm:$0xff]
  %v28 = vld [vmem:[%s0 + $0x78] sm:$0xff]
  %v29 = vld [vmem:[%s1] sm:$0xff]
  %v30 = vld [vmem:[%s1 + $0x8] sm:$0xff]
  %v31 = vld [vmem:[%s1 + $0x10] sm:$0xff]
  %v32 = vld [vmem:[%s1 + $0x18] sm:$0xff]
  %v33 = vld [vmem:[%s1 + $0x20] sm:$0xf]
  %vm34 = vcmask 293888
  %v36 = vsel %vm34, %v13, 0
  %v39 = vsel %vm34, %v14, 0
  %v42 = vsel %vm34, %v15, 0
  %v45 = vsel %vm34, %v16, 0
  %v48 = vsel %vm34, %v17, 0
  %v51 = vsel %vm34, %v18, 0
  %v54 = vsel %vm34, %v19, 0
  %v57 = vsel %vm34, %v20, 0
  %v60 = vsel %vm34, %v21, 0
  %v63 = vsel %vm34, %v22, 0
  %v66 = vsel %vm34, %v23, 0
  %v69 = vsel %vm34, %v24, 0
  %v72 = vsel %vm34, %v25, 0
  %v75 = vsel %vm34, %v26, 0
  %v78 = vsel %vm34, %v27, 0
  %v81 = vsel %vm34, %v28, 0
  %vm83 = vcmask 1043456
  %v85 = vsel %vm83, %v33, 0
  %87 = vmatprep.subr.mxu0 0.0
  %88 = vmatpush1.msra.mxu0 0.0
  %89 = vmatprep.subr.mxu0 0.0
  %90 = vmatpush1.msra.mxu0 0.0
  %91 = vmatprep.subr.mxu0 0.0
  %92 = vmatpush1.msra.mxu0 0.0
  %93 = vmatprep.subr.mxu0 0.0
  %94 = vmatpush1.msra.mxu0 0.0
  %95 = vmatprep.subr.mxu0 0.0
  %96 = vmatpush1.msra.mxu0 0.0
  %97 = vmatprep.subr.mxu0 0.0
  %98 = vmatpush1.msra.mxu0 0.0
  %99 = vmatprep.subr.mxu0 0.0
  %100 = vmatpush1.msra.mxu0 0.0
  %101 = vmatprep.subr.mxu0 0.0
  %102 = vmatpush1.msra.mxu0 0.0
  %103 = vmatprep.subr.mxu0 0.0
  %104 = vmatpush1.msra.mxu0 0.0
  %105 = vmatprep.subr.mxu0 0.0
  %106 = vmatpush1.msra.mxu0 0.0
  %107 = vmatprep.subr.mxu0 0.0
  %108 = vmatpush1.msra.mxu0 0.0
  %109 = vmatprep.subr.mxu0 0.0
  %110 = vmatpush1.msra.mxu0 %v85
  %111 = vmatprep.subr.mxu0 0.0
  %112 = vmatpush1.msra.mxu0 %v32
  %113 = vmatprep.subr.mxu0 0.0
  %114 = vmatpush1.msra.mxu0 %v31
  %115 = vmatprep.subr.mxu0 0.0
  %116 = vmatpush1.msra.mxu0 %v30
  %117 = vmatprep.subr.mxu0 0.0
  %118 = vmatpush1.msra.mxu0 %v29
  %119 = vmatprep.subr.mxu0 0.0
  %120 = vmatpush2.msra.mxu0 0.0
  %121 = vmatprep.subr.mxu0 0.0
  %122 = vmatpush2.msra.mxu0 0.0
  %123 = vmatprep.subr.mxu0 0.0
  %124 = vmatpush2.msra.mxu0 0.0
  %125 = vmatprep.subr.mxu0 0.0
  %126 = vmatpush2.msra.mxu0 0.0
  %127 = vmatprep.subr.mxu0 0.0
  %128 = vmatpush2.msra.mxu0 0.0
  %129 = vmatprep.subr.mxu0 0.0
  %130 = vmatpush2.msra.mxu0 0.0
  %131 = vmatprep.subr.mxu0 0.0
  %132 = vmatpush2.msra.mxu0 0.0
  %133 = vmatprep.subr.mxu0 0.0
  %134 = vmatpush2.msra.mxu0 0.0
  %135 = vmatprep.subr.mxu0 0.0
  %136 = vmatpush2.msra.mxu0 0.0
  %137 = vmatprep.subr.mxu0 0.0
  %138 = vmatpush2.msra.mxu0 0.0
  %139 = vmatprep.subr.mxu0 0.0
  %140 = vmatpush2.msra.mxu0 0.0
  %141 = vmatprep.subr.mxu0 0.0
  %142 = vmatpush2.msra.mxu0 0.0
  %143 = vmatprep.subr.mxu0 0.0
  %144 = vmatpush2.msra.mxu0 0.0
  %145 = vmatprep.subr.mxu0 0.0
  %146 = vmatpush2.msra.mxu0 0.0
  %147 = vmatprep.subr.mxu0 0.0
  %148 = vmatpush2.msra.mxu0 0.0
  %149 = vmatprep.subr.mxu0 0.0
  %150 = vmatpush2.msra.mxu0 0.0
  %151 = vmatprep.mubr.f32.mxu0 0.0
  %152 = vmatmul.mubr.f32.gmra.mxu0 %v36
  %v153 = vpop.f32.mrf.mxu0
  %v154 = vadd.f32 0.0, %v153
  %v155 = vpop.f32.mrf.mxu0
  %156 = vmatprep.mubr.f32.mxu0 0.0
  %157 = vmatmul.mubr.f32.gmra.mxu0 %v39
  %v158 = vpop.f32.mrf.mxu0
  %v159 = vadd.f32 0.0, %v158
  %v160 = vpop.f32.mrf.mxu0
  %161 = vmatprep.mubr.f32.mxu0 0.0
  %162 = vmatmul.mubr.f32.gmra.mxu0 %v42
  %v163 = vpop.f32.mrf.mxu0
  %v164 = vadd.f32 0.0, %v163
  %v165 = vpop.f32.mrf.mxu0
  %166 = vmatprep.mubr.f32.mxu0 0.0
  %167 = vmatmul.mubr.f32.gmra.mxu0 %v45
  %v168 = vpop.f32.mrf.mxu0
  %v169 = vadd.f32 0.0, %v168
  %v170 = vpop.f32.mrf.mxu0
  %171 = vmatprep.mubr.f32.mxu0 0.0
  %172 = vmatmul.mubr.f32.gmra.mxu0 %v48
  %v173 = vpop.f32.mrf.mxu0
  %v174 = vadd.f32 0.0, %v173
  %v175 = vpop.f32.mrf.mxu0
  %176 = vmatprep.mubr.f32.mxu0 0.0
  %177 = vmatmul.mubr.f32.gmra.mxu0 %v51
  %v178 = vpop.f32.mrf.mxu0
  %v179 = vadd.f32 0.0, %v178
  %v180 = vpop.f32.mrf.mxu0
  %181 = vmatprep.mubr.f32.mxu0 0.0
  %182 = vmatmul.mubr.f32.gmra.mxu0 %v54
  %v183 = vpop.f32.mrf.mxu0
  %v184 = vadd.f32 0.0, %v183
  %v185 = vpop.f32.mrf.mxu0
  %186 = vmatprep.mubr.f32.mxu0 0.0
  %187 = vmatmul.mubr.f32.gmra.mxu0 %v57
  %v188 = vpop.f32.mrf.mxu0
  %v189 = vadd.f32 0.0, %v188
  %v190 = vpop.f32.mrf.mxu0
  %191 = vmatprep.mubr.f32.mxu0 0.0
  %192 = vmatmul.mubr.f32.gmra.mxu0 %v60
  %v193 = vpop.f32.mrf.mxu0
  %v194 = vadd.f32 0.0, %v193
  %v195 = vpop.f32.mrf.mxu0
  %196 = vmatprep.mubr.f32.mxu0 0.0
  %197 = vmatmul.mubr.f32.gmra.mxu0 %v63
  %v198 = vpop.f32.mrf.mxu0
  %v199 = vadd.f32 0.0, %v198
  %v200 = vpop.f32.mrf.mxu0
  %201 = vmatprep.mubr.f32.mxu0 0.0
  %202 = vmatmul.mubr.f32.gmra.mxu0 %v66
  %v203 = vpop.f32.mrf.mxu0
  %v204 = vadd.f32 0.0, %v203
  %v205 = vpop.f32.mrf.mxu0
  %206 = vmatprep.mubr.f32.mxu0 0.0
  %207 = vmatmul.mubr.f32.gmra.mxu0 %v69
  %v208 = vpop.f32.mrf.mxu0
  %v209 = vadd.f32 0.0, %v208
  %v210 = vpop.f32.mrf.mxu0
  %211 = vmatprep.mubr.f32.mxu0 0.0
  %212 = vmatmul.mubr.f32.gmra.mxu0 %v72
  %v213 = vpop.f32.mrf.mxu0
  %v214 = vadd.f32 0.0, %v213
  %v215 = vpop.f32.mrf.mxu0
  %216 = vmatprep.mubr.f32.mxu0 0.0
  %217 = vmatmul.mubr.f32.gmra.mxu0 %v75
  %v218 = vpop.f32.mrf.mxu0
  %v219 = vadd.f32 0.0, %v218
  %v220 = vpop.f32.mrf.mxu0
  %221 = vmatprep.mubr.f32.mxu0 0.0
  %222 = vmatmul.mubr.f32.gmra.mxu0 %v78
  %v223 = vpop.f32.mrf.mxu0
  %v224 = vadd.f32 0.0, %v223
  %v225 = vpop.f32.mrf.mxu0
  %226 = vmatprep.mubr.f32.mxu0 0.0
  %227 = vmatmul.mubr.f32.gmra.mxu0 %v81
  %v228 = vpop.f32.mrf.mxu0
  %v229 = vadd.f32 0.0, %v228
  %v230 = vpop.f32.mrf.mxu0
  %231 = vdwg.mxu0
  %vm232 = vcmask 31744
  %233 = vst.msk [vmem:[%s2] sm:$0xff] %vm232, %v154
  %234 = vst.msk [vmem:[%s2 + $0x8] sm:$0xff] %vm232, %v159
  %235 = vst.msk [vmem:[%s2 + $0x10] sm:$0xff] %vm232, %v164
  %236 = vst.msk [vmem:[%s2 + $0x18] sm:$0xff] %vm232, %v169
  %237 = vst.msk [vmem:[%s2 + $0x20] sm:$0xff] %vm232, %v174
  %238 = vst.msk [vmem:[%s2 + $0x28] sm:$0xff] %vm232, %v179
  %239 = vst.msk [vmem:[%s2 + $0x30] sm:$0xff] %vm232, %v184
  %240 = vst.msk [vmem:[%s2 + $0x38] sm:$0xff] %vm232, %v189
  %241 = vst.msk [vmem:[%s2 + $0x40] sm:$0xff] %vm232, %v194
  %242 = vst.msk [vmem:[%s2 + $0x48] sm:$0xff] %vm232, %v199
  %243 = vst.msk [vmem:[%s2 + $0x50] sm:$0xff] %vm232, %v204
  %244 = vst.msk [vmem:[%s2 + $0x58] sm:$0xff] %vm232, %v209
  %245 = vst.msk [vmem:[%s2 + $0x60] sm:$0xff] %vm232, %v214
  %246 = vst.msk [vmem:[%s2 + $0x68] sm:$0xff] %vm232, %v219
  %247 = vst.msk [vmem:[%s2 + $0x70] sm:$0xff] %vm232, %v224
  %248 = vst.msk [vmem:[%s2 + $0x78] sm:$0xff] %vm232, %v229
  %v249 = vsel %vm232, %v154, 0.0
  %v250 = vsel %vm232, %v159, 0.0
  %v251 = vadd.f32 %v249, %v250
  %v252 = vsel %vm232, %v164, 0.0
  %v253 = vadd.f32 %v251, %v252
  %v254 = vsel %vm232, %v169, 0.0
  %v255 = vadd.f32 %v253, %v254
  %v256 = vsel %vm232, %v174, 0.0
  %v257 = vadd.f32 %v255, %v256
  %v258 = vsel %vm232, %v179, 0.0
  %v259 = vadd.f32 %v257, %v258
  %v260 = vsel %vm232, %v184, 0.0
  %v261 = vadd.f32 %v259, %v260
  %v262 = vsel %vm232, %v189, 0.0
  %v263 = vadd.f32 %v261, %v262
  %v264 = vsel %vm232, %v194, 0.0
  %v265 = vadd.f32 %v263, %v264
  %v266 = vsel %vm232, %v199, 0.0
  %v267 = vadd.f32 %v265, %v266
  %v268 = vsel %vm232, %v204, 0.0
  %v269 = vadd.f32 %v267, %v268
  %v270 = vsel %vm232, %v209, 0.0
  %v271 = vadd.f32 %v269, %v270
  %v272 = vsel %vm232, %v214, 0.0
  %v273 = vadd.f32 %v271, %v272
  %v274 = vsel %vm232, %v219, 0.0
  %v275 = vadd.f32 %v273, %v274
  %v276 = vsel %vm232, %v224, 0.0
  %v277 = vadd.f32 %v275, %v276
  %v278 = vsel %vm232, %v229, 0.0
  %v279 = vadd.f32 %v277, %v278
  %v280 = vrot.slane %v279, 4
  %v281 = vadd.f32 %v279, %v280
  %v282 = vrot.slane %v281, 2
  %v283 = vadd.f32 %v281, %v282
  %v284 = vrot.slane %v283, 1
  %v285 = vadd.f32 %v283, %v284
  %v286 = vmul.f32 %v154, %v154
  %v287 = vmul.f32 %v159, %v159
  %v288 = vmul.f32 %v164, %v164
  %v289 = vmul.f32 %v169, %v169
  %v290 = vmul.f32 %v174, %v174
  %v291 = vmul.f32 %v179, %v179
  %v292 = vmul.f32 %v184, %v184
  %v293 = vmul.f32 %v189, %v189
  %v294 = vmul.f32 %v194, %v194
  %v295 = vmul.f32 %v199, %v199
  %v296 = vmul.f32 %v204, %v204
  %v297 = vmul.f32 %v209, %v209
  %v298 = vmul.f32 %v214, %v214
  %v299 = vmul.f32 %v219, %v219
  %v300 = vmul.f32 %v224, %v224
  %v301 = vmul.f32 %v229, %v229
  %v302 = vsel %vm232, %v286, 0.0
  %v303 = vsel %vm232, %v287, 0.0
  %v304 = vadd.f32 %v302, %v303
  %v305 = vsel %vm232, %v288, 0.0
  %v306 = vadd.f32 %v304, %v305
  %v307 = vsel %vm232, %v289, 0.0
  %v308 = vadd.f32 %v306, %v307
  %v309 = vsel %vm232, %v290, 0.0
  %v310 = vadd.f32 %v308, %v309
  %v311 = vsel %vm232, %v291, 0.0
  %v312 = vadd.f32 %v310, %v311
  %v313 = vsel %vm232, %v292, 0.0
  %v314 = vadd.f32 %v312, %v313
  %v315 = vsel %vm232, %v293, 0.0
  %v316 = vadd.f32 %v314, %v315
  %v317 = vsel %vm232, %v294, 0.0
  %v318 = vadd.f32 %v316, %v317
  %v319 = vsel %vm232, %v295, 0.0
  %v320 = vadd.f32 %v318, %v319
  %v321 = vsel %vm232, %v296, 0.0
  %v322 = vadd.f32 %v320, %v321
  %v323 = vsel %vm232, %v297, 0.0
  %v324 = vadd.f32 %v322, %v323
  %v325 = vsel %vm232, %v298, 0.0
  %v326 = vadd.f32 %v324, %v325
  %v327 = vsel %vm232, %v299, 0.0
  %v328 = vadd.f32 %v326, %v327
  %v329 = vsel %vm232, %v300, 0.0
  %v330 = vadd.f32 %v328, %v329
  %v331 = vsel %vm232, %v301, 0.0
  %v332 = vadd.f32 %v330, %v331
  %v333 = vrot.slane %v332, 4
  %v334 = vadd.f32 %v332, %v333
  %v335 = vrot.slane %v334, 2
  %v336 = vadd.f32 %v334, %v335
  %v337 = vrot.slane %v336, 1
  %v338 = vadd.f32 %v336, %v337
  %vm339 = vcmask 1040384
  %v340 = vsel %vm339, %v285, %v338
  %vm341 = vcmask 25600
  %342 = vst.msk [vmem:[%s3] sm:$0x3] %vm341, %v340
  // Predicated region
  $region10: #{bottleneck_forward.8} parent=0 // pred_check
    _
  $region11: #{bottleneck_forward.8} parent=0 // pred_check_branch
    %344 = sbr.rel (0) target = $region13
  $region12: #{bottleneck_forward.8} parent=0 // pred_region
    _
  $region13: #{bottleneck_forward.8} parent=0 // pred_fallthru
    _
  // Predicated region
  $region14: #{bottleneck_forward.8} parent=0 // pred_check
    _
  $region15: #{bottleneck_forward.8} parent=0 // pred_check_branch
    %346 = sbr.rel (0) target = $region17
  $region16: #{bottleneck_forward.8} parent=0 // pred_region
    _
  $region17: #{bottleneck_forward.8} parent=0 // pred_fallthru
    _
  // Predicated region
  $region18: #{bottleneck_forward.8} parent=0 // pred_check
    _
  $region19: #{bottleneck_forward.8} parent=0 // pred_check_branch
    %348 = sbr.rel (0) target = $region21
  $region20: #{bottleneck_forward.8} parent=0 // pred_region
    _
  $region21: #{bottleneck_forward.8} parent=0 // pred_fallthru
    _
  // Predicated region
  $region22: #{bottleneck_forward.8} parent=0 // pred_check
    _
  $region23: #{bottleneck_forward.8} parent=0 // pred_check_branch
    %350 = sbr.rel (0) target = $region25
  $region24: #{bottleneck_forward.8} parent=0 // pred_region
    _
  $region25: #{bottleneck_forward.8} parent=0 // pred_fallthru
    _

// kernel: bottleneck_forward.9
$region0: #{bottleneck_forward.9}
  #allocation0 [shape = 'u32[]', space=smem, size = 0x4, offset = 0x4, fixed_abs, tag = 'smem constant byte address 0x4 - core index']
  #allocation1 [shape = 'u32[144,128]{1,0:T(1,128)}', space=vmem, size = 0x12000, scoped, tag = 'internal scratch']
  %s0 = inlined_call_operand.vmem [shape: f32[128,4], index: 0, kind: input, shape index: {}]
  %s1 = inlined_call_operand.vmem [shape: f32[4,16], index: 1, kind: input, shape index: {}]
  %s2 = inlined_call_operand.vmem [shape: f32[128,16], index: 2, kind: output, shape index: {0}]
  %s3 = inlined_call_operand.vmem [shape: f32[1,2,16], index: 3, kind: output, shape index: {1}]
  %4 = xla_tuple %s2, %s3
  %s5 = sld [smem:[#allocation0]]
  $region26: #{bottleneck_forward.9} parent=0
    _
  %s7 = ssub.s32 1, %s5
  %s8 = scalar_select 0, %s7, %s5
  // Predicated region
  $region2: #{bottleneck_forward.9} parent=0 // pred_check
    _
  $region3: #{bottleneck_forward.9} parent=0 // pred_check_branch
    %10 = sbr.rel (0) target = $region5
  $region4: #{bottleneck_forward.9} parent=0 // pred_region
    _
  $region5: #{bottleneck_forward.9} parent=0 // pred_fallthru
    _
  // Predicated region
  $region6: #{bottleneck_forward.9} parent=0 // pred_check
    _
  $region7: #{bottleneck_forward.9} parent=0 // pred_check_branch
    %12 = sbr.rel (0) target = $region9
  $region8: #{bottleneck_forward.9} parent=0 // pred_region
    _
  $region9: #{bottleneck_forward.9} parent=0 // pred_fallthru
    _
  %v13 = vld [vmem:[%s0] sm:$0xff]
  %v14 = vld [vmem:[%s0 + $0x8] sm:$0xff]
  %v15 = vld [vmem:[%s0 + $0x10] sm:$0xff]
  %v16 = vld [vmem:[%s0 + $0x18] sm:$0xff]
  %v17 = vld [vmem:[%s0 + $0x20] sm:$0xff]
  %v18 = vld [vmem:[%s0 + $0x28] sm:$0xff]
  %v19 = vld [vmem:[%s0 + $0x30] sm:$0xff]
  %v20 = vld [vmem:[%s0 + $0x38] sm:$0xff]
  %v21 = vld [vmem:[%s0 + $0x40] sm:$0xff]
  %v22 = vld [vmem:[%s0 + $0x48] sm:$0xff]
  %v23 = vld [vmem:[%s0 + $0x50] sm:$0xff]
  %v24 = vld [vmem:[%s0 + $0x58] sm:$0xff]
  %v25 = vld [vmem:[%s0 + $0x60] sm:$0xff]
  %v26 = vld [vmem:[%s0 + $0x68] sm:$0xff]
  %v27 = vld [vmem:[%s0 + $0x70] sm:$0xff]
  %v28 = vld [vmem:[%s0 + $0x78] sm:$0xff]
  %v29 = vld [vmem:[%s1] sm:$0xf]
  %vm30 = vcmask 31744
  %v32 = vsel %vm30, %v13, 0
  %v35 = vsel %vm30, %v14, 0
  %v38 = vsel %vm30, %v15, 0
  %v41 = vsel %vm30, %v16, 0
  %v44 = vsel %vm30, %v17, 0
  %v47 = vsel %vm30, %v18, 0
  %v50 = vsel %vm30, %v19, 0
  %v53 = vsel %vm30, %v20, 0
  %v56 = vsel %vm30, %v21, 0
  %v59 = vsel %vm30, %v22, 0
  %v62 = vsel %vm30, %v23, 0
  %v65 = vsel %vm30, %v24, 0
  %v68 = vsel %vm30, %v25, 0
  %v71 = vsel %vm30, %v26, 0
  %v74 = vsel %vm30, %v27, 0
  %v77 = vsel %vm30, %v28, 0
  %vm79 = vcmask 1043456
  %v81 = vsel %vm79, %v29, 0
  %83 = vmatprep.subr.mxu0 0.0
  %84 = vmatpush1.msra.mxu0 0.0
  %85 = vmatprep.subr.mxu0 0.0
  %86 = vmatpush1.msra.mxu0 0.0
  %87 = vmatprep.subr.mxu0 0.0
  %88 = vmatpush1.msra.mxu0 0.0
  %89 = vmatprep.subr.mxu0 0.0
  %90 = vmatpush1.msra.mxu0 0.0
  %91 = vmatprep.subr.mxu0 0.0
  %92 = vmatpush1.msra.mxu0 0.0
  %93 = vmatprep.subr.mxu0 0.0
  %94 = vmatpush1.msra.mxu0 0.0
  %95 = vmatprep.subr.mxu0 0.0
  %96 = vmatpush1.msra.mxu0 0.0
  %97 = vmatprep.subr.mxu0 0.0
  %98 = vmatpush1.msra.mxu0 0.0
  %99 = vmatprep.subr.mxu0 0.0
  %100 = vmatpush1.msra.mxu0 0.0
  %101 = vmatprep.subr.mxu0 0.0
  %102 = vmatpush1.msra.mxu0 0.0
  %103 = vmatprep.subr.mxu0 0.0
  %104 = vmatpush1.msra.mxu0 0.0
  %105 = vmatprep.subr.mxu0 0.0
  %106 = vmatpush1.msra.mxu0 0.0
  %107 = vmatprep.subr.mxu0 0.0
  %108 = vmatpush1.msra.mxu0 0.0
  %109 = vmatprep.subr.mxu0 0.0
  %110 = vmatpush1.msra.mxu0 0.0
  %111 = vmatprep.subr.mxu0 0.0
  %112 = vmatpush1.msra.mxu0 0.0
  %113 = vmatprep.subr.mxu0 0.0
  %114 = vmatpush1.msra.mxu0 %v81
  %115 = vmatprep.subr.mxu0 0.0
  %116 = vmatpush2.msra.mxu0 0.0
  %117 = vmatprep.subr.mxu0 0.0
  %118 = vmatpush2.msra.mxu0 0.0
  %119 = vmatprep.subr.mxu0 0.0
  %120 = vmatpush2.msra.mxu0 0.0
  %121 = vmatprep.subr.mxu0 0.0
  %122 = vmatpush2.msra.mxu0 0.0
  %123 = vmatprep.subr.mxu0 0.0
  %124 = vmatpush2.msra.mxu0 0.0
  %125 = vmatprep.subr.mxu0 0.0
  %126 = vmatpush2.msra.mxu0 0.0
  %127 = vmatprep.subr.mxu0 0.0
  %128 = vmatpush2.msra.mxu0 0.0
  %129 = vmatprep.subr.mxu0 0.0
  %130 = vmatpush2.msra.mxu0 0.0
  %131 = vmatprep.subr.mxu0 0.0
  %132 = vmatpush2.msra.mxu0 0.0
  %133 = vmatprep.subr.mxu0 0.0
  %134 = vmatpush2.msra.mxu0 0.0
  %135 = vmatprep.subr.mxu0 0.0
  %136 = vmatpush2.msra.mxu0 0.0
  %137 = vmatprep.subr.mxu0 0.0
  %138 = vmatpush2.msra.mxu0 0.0
  %139 = vmatprep.subr.mxu0 0.0
  %140 = vmatpush2.msra.mxu0 0.0
  %141 = vmatprep.subr.mxu0 0.0
  %142 = vmatpush2.msra.mxu0 0.0
  %143 = vmatprep.subr.mxu0 0.0
  %144 = vmatpush2.msra.mxu0 0.0
  %145 = vmatprep.subr.mxu0 0.0
  %146 = vmatpush2.msra.mxu0 0.0
  %147 = vmatprep.mubr.f32.mxu0 0.0
  %148 = vmatmul.mubr.f32.gmra.mxu0 %v32
  %v149 = vpop.f32.mrf.mxu0
  %v150 = vadd.f32 0.0, %v149
  %v151 = vpop.f32.mrf.mxu0
  %152 = vmatprep.mubr.f32.mxu0 0.0
  %153 = vmatmul.mubr.f32.gmra.mxu0 %v35
  %v154 = vpop.f32.mrf.mxu0
  %v155 = vadd.f32 0.0, %v154
  %v156 = vpop.f32.mrf.mxu0
  %157 = vmatprep.mubr.f32.mxu0 0.0
  %158 = vmatmul.mubr.f32.gmra.mxu0 %v38
  %v159 = vpop.f32.mrf.mxu0
  %v160 = vadd.f32 0.0, %v159
  %v161 = vpop.f32.mrf.mxu0
  %162 = vmatprep.mubr.f32.mxu0 0.0
  %163 = vmatmul.mubr.f32.gmra.mxu0 %v41
  %v164 = vpop.f32.mrf.mxu0
  %v165 = vadd.f32 0.0, %v164
  %v166 = vpop.f32.mrf.mxu0
  %167 = vmatprep.mubr.f32.mxu0 0.0
  %168 = vmatmul.mubr.f32.gmra.mxu0 %v44
  %v169 = vpop.f32.mrf.mxu0
  %v170 = vadd.f32 0.0, %v169
  %v171 = vpop.f32.mrf.mxu0
  %172 = vmatprep.mubr.f32.mxu0 0.0
  %173 = vmatmul.mubr.f32.gmra.mxu0 %v47
  %v174 = vpop.f32.mrf.mxu0
  %v175 = vadd.f32 0.0, %v174
  %v176 = vpop.f32.mrf.mxu0
  %177 = vmatprep.mubr.f32.mxu0 0.0
  %178 = vmatmul.mubr.f32.gmra.mxu0 %v50
  %v179 = vpop.f32.mrf.mxu0
  %v180 = vadd.f32 0.0, %v179
  %v181 = vpop.f32.mrf.mxu0
  %182 = vmatprep.mubr.f32.mxu0 0.0
  %183 = vmatmul.mubr.f32.gmra.mxu0 %v53
  %v184 = vpop.f32.mrf.mxu0
  %v185 = vadd.f32 0.0, %v184
  %v186 = vpop.f32.mrf.mxu0
  %187 = vmatprep.mubr.f32.mxu0 0.0
  %188 = vmatmul.mubr.f32.gmra.mxu0 %v56
  %v189 = vpop.f32.mrf.mxu0
  %v190 = vadd.f32 0.0, %v189
  %v191 = vpop.f32.mrf.mxu0
  %192 = vmatprep.mubr.f32.mxu0 0.0
  %193 = vmatmul.mubr.f32.gmra.mxu0 %v59
  %v194 = vpop.f32.mrf.mxu0
  %v195 = vadd.f32 0.0, %v194
  %v196 = vpop.f32.mrf.mxu0
  %197 = vmatprep.mubr.f32.mxu0 0.0
  %198 = vmatmul.mubr.f32.gmra.mxu0 %v62
  %v199 = vpop.f32.mrf.mxu0
  %v200 = vadd.f32 0.0, %v199
  %v201 = vpop.f32.mrf.mxu0
  %202 = vmatprep.mubr.f32.mxu0 0.0
  %203 = vmatmul.mubr.f32.gmra.mxu0 %v65
  %v204 = vpop.f32.mrf.mxu0
  %v205 = vadd.f32 0.0, %v204
  %v206 = vpop.f32.mrf.mxu0
  %207 = vmatprep.mubr.f32.mxu0 0.0
  %208 = vmatmul.mubr.f32.gmra.mxu0 %v68
  %v209 = vpop.f32.mrf.mxu0
  %v210 = vadd.f32 0.0, %v209
  %v211 = vpop.f32.mrf.mxu0
  %212 = vmatprep.mubr.f32.mxu0 0.0
  %213 = vmatmul.mubr.f32.gmra.mxu0 %v71
  %v214 = vpop.f32.mrf.mxu0
  %v215 = vadd.f32 0.0, %v214
  %v216 = vpop.f32.mrf.mxu0
  %217 = vmatprep.mubr.f32.mxu0 0.0
  %218 = vmatmul.mubr.f32.gmra.mxu0 %v74
  %v219 = vpop.f32.mrf.mxu0
  %v220 = vadd.f32 0.0, %v219
  %v221 = vpop.f32.mrf.mxu0
  %222 = vmatprep.mubr.f32.mxu0 0.0
  %223 = vmatmul.mubr.f32.gmra.mxu0 %v77
  %v224 = vpop.f32.mrf.mxu0
  %v225 = vadd.f32 0.0, %v224
  %v226 = vpop.f32.mrf.mxu0
  %227 = vdwg.mxu0
  %vm228 = vcmask 130048
  %229 = vst.msk [vmem:[%s2] sm:$0xff] %vm228, %v150
  %230 = vst.msk [vmem:[%s2 + $0x8] sm:$0xff] %vm228, %v155
  %231 = vst.msk [vmem:[%s2 + $0x10] sm:$0xff] %vm228, %v160
  %232 = vst.msk [vmem:[%s2 + $0x18] sm:$0xff] %vm228, %v165
  %233 = vst.msk [vmem:[%s2 + $0x20] sm:$0xff] %vm228, %v170
  %234 = vst.msk [vmem:[%s2 + $0x28] sm:$0xff] %vm228, %v175
  %235 = vst.msk [vmem:[%s2 + $0x30] sm:$0xff] %vm228, %v180
  %236 = vst.msk [vmem:[%s2 + $0x38] sm:$0xff] %vm228, %v185
  %237 = vst.msk [vmem:[%s2 + $0x40] sm:$0xff] %vm228, %v190
  %238 = vst.msk [vmem:[%s2 + $0x48] sm:$0xff] %vm228, %v195
  %239 = vst.msk [vmem:[%s2 + $0x50] sm:$0xff] %vm228, %v200
  %240 = vst.msk [vmem:[%s2 + $0x58] sm:$0xff] %vm228, %v205
  %241 = vst.msk [vmem:[%s2 + $0x60] sm:$0xff] %vm228, %v210
  %242 = vst.msk [vmem:[%s2 + $0x68] sm:$0xff] %vm228, %v215
  %243 = vst.msk [vmem:[%s2 + $0x70] sm:$0xff] %vm228, %v220
  %244 = vst.msk [vmem:[%s2 + $0x78] sm:$0xff] %vm228, %v225
  %v245 = vsel %vm228, %v150, 0.0
  %v246 = vsel %vm228, %v155, 0.0
  %v247 = vadd.f32 %v245, %v246
  %v248 = vsel %vm228, %v160, 0.0
  %v249 = vadd.f32 %v247, %v248
  %v250 = vsel %vm228, %v165, 0.0
  %v251 = vadd.f32 %v249, %v250
  %v252 = vsel %vm228, %v170, 0.0
  %v253 = vadd.f32 %v251, %v252
  %v254 = vsel %vm228, %v175, 0.0
  %v255 = vadd.f32 %v253, %v254
  %v256 = vsel %vm228, %v180, 0.0
  %v257 = vadd.f32 %v255, %v256
  %v258 = vsel %vm228, %v185, 0.0
  %v259 = vadd.f32 %v257, %v258
  %v260 = vsel %vm228, %v190, 0.0
  %v261 = vadd.f32 %v259, %v260
  %v262 = vsel %vm228, %v195, 0.0
  %v263 = vadd.f32 %v261, %v262
  %v264 = vsel %vm228, %v200, 0.0
  %v265 = vadd.f32 %v263, %v264
  %v266 = vsel %vm228, %v205, 0.0
  %v267 = vadd.f32 %v265, %v266
  %v268 = vsel %vm228, %v210, 0.0
  %v269 = vadd.f32 %v267, %v268
  %v270 = vsel %vm228, %v215, 0.0
  %v271 = vadd.f32 %v269, %v270
  %v272 = vsel %vm228, %v220, 0.0
  %v273 = vadd.f32 %v271, %v272
  %v274 = vsel %vm228, %v225, 0.0
  %v275 = vadd.f32 %v273, %v274
  %v276 = vrot.slane %v275, 4
  %v277 = vadd.f32 %v275, %v276
  %v278 = vrot.slane %v277, 2
  %v279 = vadd.f32 %v277, %v278
  %v280 = vrot.slane %v279, 1
  %v281 = vadd.f32 %v279, %v280
  %v282 = vmul.f32 %v150, %v150
  %v283 = vmul.f32 %v155, %v155
  %v284 = vmul.f32 %v160, %v160
  %v285 = vmul.f32 %v165, %v165
  %v286 = vmul.f32 %v170, %v170
  %v287 = vmul.f32 %v175, %v175
  %v288 = vmul.f32 %v180, %v180
  %v289 = vmul.f32 %v185, %v185
  %v290 = vmul.f32 %v190, %v190
  %v291 = vmul.f32 %v195, %v195
  %v292 = vmul.f32 %v200, %v200
  %v293 = vmul.f32 %v205, %v205
  %v294 = vmul.f32 %v210, %v210
  %v295 = vmul.f32 %v215, %v215
  %v296 = vmul.f32 %v220, %v220
  %v297 = vmul.f32 %v225, %v225
  %v298 = vsel %vm228, %v282, 0.0
  %v299 = vsel %vm228, %v283, 0.0
  %v300 = vadd.f32 %v298, %v299
  %v301 = vsel %vm228, %v284, 0.0
  %v302 = vadd.f32 %v300, %v301
  %v303 = vsel %vm228, %v285, 0.0
  %v304 = vadd.f32 %v302, %v303
  %v305 = vsel %vm228, %v286, 0.0
  %v306 = vadd.f32 %v304, %v305
  %v307 = vsel %vm228, %v287, 0.0
  %v308 = vadd.f32 %v306, %v307
  %v309 = vsel %vm228, %v288, 0.0
  %v310 = vadd.f32 %v308, %v309
  %v311 = vsel %vm228, %v289, 0.0
  %v312 = vadd.f32 %v310, %v311
  %v313 = vsel %vm228, %v290, 0.0
  %v314 = vadd.f32 %v312, %v313
  %v315 = vsel %vm228, %v291, 0.0
  %v316 = vadd.f32 %v314, %v315
  %v317 = vsel %vm228, %v292, 0.0
  %v318 = vadd.f32 %v316, %v317
  %v319 = vsel %vm228, %v293, 0.0
  %v320 = vadd.f32 %v318, %v319
  %v321 = vsel %vm228, %v294, 0.0
  %v322 = vadd.f32 %v320, %v321
  %v323 = vsel %vm228, %v295, 0.0
  %v324 = vadd.f32 %v322, %v323
  %v325 = vsel %vm228, %v296, 0.0
  %v326 = vadd.f32 %v324, %v325
  %v327 = vsel %vm228, %v297, 0.0
  %v328 = vadd.f32 %v326, %v327
  %v329 = vrot.slane %v328, 4
  %v330 = vadd.f32 %v328, %v329
  %v331 = vrot.slane %v330, 2
  %v332 = vadd.f32 %v330, %v331
  %v333 = vrot.slane %v332, 1
  %v334 = vadd.f32 %v332, %v333
  %vm335 = vcmask 1040384
  %v336 = vsel %vm335, %v281, %v334
  %vm337 = vcmask 123904
  %338 = vst.msk [vmem:[%s3] sm:$0x3] %vm337, %v336
  // Predicated region
  $region10: #{bottleneck_forward.9} parent=0 // pred_check
    _
  $region11: #{bottleneck_forward.9} parent=0 // pred_check_branch
    %340 = sbr.rel (0) target = $region13
  $region12: #{bottleneck_forward.9} parent=0 // pred_region
    _
  $region13: #{bottleneck_forward.9} parent=0 // pred_fallthru
    _
  // Predicated region
  $region14: #{bottleneck_forward.9} parent=0 // pred_check
    _
  $region15: #{bottleneck_forward.9} parent=0 // pred_check_branch
    %342 = sbr.rel (0) target = $region17
  $region16: #{bottleneck_forward.9} parent=0 // pred_region
    _
  $region17: #{bottleneck_forward.9} parent=0 // pred_fallthru
    _
  // Predicated region
  $region18: #{bottleneck_forward.9} parent=0 // pred_check
    _
  $region19: #{bottleneck_forward.9} parent=0 // pred_check_branch
    %344 = sbr.rel (0) target = $region21
  $region20: #{bottleneck_forward.9} parent=0 // pred_region
    _
  $region21: #{bottleneck_forward.9} parent=0 // pred_fallthru
    _
  // Predicated region
  $region22: #{bottleneck_forward.9} parent=0 // pred_check
    _
  $region23: #{bottleneck_forward.9} parent=0 // pred_check_branch
    %346 = sbr.rel (0) target = $region25
  $region24: #{bottleneck_forward.9} parent=0 // pred_region
    _
  $region25: #{bottleneck_forward.9} parent=0 // pred_fallthru
    _

// kernel: bottleneck_forward.11
$region0: #{bottleneck_forward.11}
  #allocation0 [shape = 'u32[]', space=smem, size = 0x4, offset = 0x4, fixed_abs, tag = 'smem constant byte address 0x4 - core index']
  #allocation1 [shape = 'u32[144,128]{1,0:T(1,128)}', space=vmem, size = 0x12000, scoped, tag = 'internal scratch']
  %s0 = inlined_call_operand.vmem [shape: f32[128,16], index: 0, kind: input, shape index: {}]
  %s1 = inlined_call_operand.vmem [shape: f32[1,16], index: 1, kind: input, shape index: {}]
  %s2 = inlined_call_operand.vmem [shape: f32[1,16], index: 2, kind: input, shape index: {}]
  %s3 = inlined_call_operand.vmem [shape: f32[128,16], index: 3, kind: input, shape index: {}]
  %s4 = inlined_call_operand.vmem [shape: f32[1,16], index: 4, kind: input, shape index: {}]
  %s5 = inlined_call_operand.vmem [shape: f32[1,16], index: 5, kind: input, shape index: {}]
  %s6 = inlined_call_operand.hbm [shape: f32[128,16], index: 6, kind: output, shape index: {}]
  %s7 = sld [smem:[#allocation0]]
  $region34: #{bottleneck_forward.11} parent=0
    _
  %s9 = ssub.s32 1, %s7
  %s10 = scalar_select 0, %s9, %s7
  $region1: #{bottleneck_forward.11} parent=0
    #allocation2 [shape = 'u8[65536]{0}', space=vmem, size = 0x10000, scoped, tag = 'output window, operand 0, single buffered']
    #allocation3 [shape = 's32[1]{0}', space=sflag, size = 0x4, scoped, tag = 'scoped memory for bottleneck_forward.11']
    %11 = vsyncpa [#allocation3], 0
    // Predicated region
    $region2: #{bottleneck_forward.11} parent=1 // pred_check
      _
    $region3: #{bottleneck_forward.11} parent=1 // pred_check_branch
      %13 = sbr.rel (0) target = $region5
    $region4: #{bottleneck_forward.11} parent=1 // pred_region
      _
    $region5: #{bottleneck_forward.11} parent=1 // pred_fallthru
      _
    // Predicated region
    $region6: #{bottleneck_forward.11} parent=1 // pred_check
      _
    $region7: #{bottleneck_forward.11} parent=1 // pred_check_branch
      %15 = sbr.rel (0) target = $region9
    $region8: #{bottleneck_forward.11} parent=1 // pred_region
      _
    $region9: #{bottleneck_forward.11} parent=1 // pred_fallthru
      _
    // Predicated region
    $region10: #{bottleneck_forward.11} parent=1 // pred_check
      _
    $region11: #{bottleneck_forward.11} parent=1 // pred_check_branch
      %17 = sbr.rel (0) target = $region13
    $region12: #{bottleneck_forward.11} parent=1 // pred_region
      _
    $region13: #{bottleneck_forward.11} parent=1 // pred_fallthru
      _
    // Predicated region
    $region14: #{bottleneck_forward.11} parent=1 // pred_check
      _
    $region15: #{bottleneck_forward.11} parent=1 // pred_check_branch
      %19 = sbr.rel (0) target = $region17
    $region16: #{bottleneck_forward.11} parent=1 // pred_region
      _
    $region17: #{bottleneck_forward.11} parent=1 // pred_fallthru
      _
    // Predicated region
    $region18: #{bottleneck_forward.11} parent=1 // pred_check
      _
    $region19: #{bottleneck_forward.11} parent=1 // pred_check_branch
      %21 = sbr.rel (0) target = $region21
    $region20: #{bottleneck_forward.11} parent=1 // pred_region
      _
    $region21: #{bottleneck_forward.11} parent=1 // pred_fallthru
      _
    // Predicated region
    $region22: #{bottleneck_forward.11} parent=1 // pred_check
      _
    $region23: #{bottleneck_forward.11} parent=1 // pred_check_branch
      %23 = sbr.rel (0) target = $region25
    $region24: #{bottleneck_forward.11} parent=1 // pred_region
      _
    $region25: #{bottleneck_forward.11} parent=1 // pred_fallthru
      _
    %v24 = vld [vmem:[%s0] sm:$0xff]
    %v25 = vld [vmem:[%s0 + $0x8] sm:$0xff]
    %v26 = vld [vmem:[%s0 + $0x10] sm:$0xff]
    %v27 = vld [vmem:[%s0 + $0x18] sm:$0xff]
    %v28 = vld [vmem:[%s0 + $0x20] sm:$0xff]
    %v29 = vld [vmem:[%s0 + $0x28] sm:$0xff]
    %v30 = vld [vmem:[%s0 + $0x30] sm:$0xff]
    %v31 = vld [vmem:[%s0 + $0x38] sm:$0xff]
    %v32 = vld [vmem:[%s0 + $0x40] sm:$0xff]
    %v33 = vld [vmem:[%s0 + $0x48] sm:$0xff]
    %v34 = vld [vmem:[%s0 + $0x50] sm:$0xff]
    %v35 = vld [vmem:[%s0 + $0x58] sm:$0xff]
    %v36 = vld [vmem:[%s0 + $0x60] sm:$0xff]
    %v37 = vld [vmem:[%s0 + $0x68] sm:$0xff]
    %v38 = vld [vmem:[%s0 + $0x70] sm:$0xff]
    %v39 = vld [vmem:[%s0 + $0x78] sm:$0xff]
    %v40 = vld [vmem:[%s1] sm:$0x1]
    %v42 = vlaneseq
    %v43 = vshrl.u32 %v42, 7
    %v44 = vsub.s32 0, %v43
    %v45 = vrot.slane %v40, %v44
    %v47 = vmul.f32 %v24, %v45
    %v48 = vmul.f32 %v25, %v45
    %v49 = vmul.f32 %v26, %v45
    %v50 = vmul.f32 %v27, %v45
    %v51 = vmul.f32 %v28, %v45
    %v52 = vmul.f32 %v29, %v45
    %v53 = vmul.f32 %v30, %v45
    %v54 = vmul.f32 %v31, %v45
    %v55 = vmul.f32 %v32, %v45
    %v56 = vmul.f32 %v33, %v45
    %v57 = vmul.f32 %v34, %v45
    %v58 = vmul.f32 %v35, %v45
    %v59 = vmul.f32 %v36, %v45
    %v60 = vmul.f32 %v37, %v45
    %v61 = vmul.f32 %v38, %v45
    %v62 = vmul.f32 %v39, %v45
    %v63 = vld [vmem:[%s2] sm:$0x1]
    %v65 = vlaneseq
    %v66 = vshrl.u32 %v65, 7
    %v67 = vsub.s32 0, %v66
    %v68 = vrot.slane %v63, %v67
    %v70 = vadd.f32 %v47, %v68
    %v71 = vadd.f32 %v48, %v68
    %v72 = vadd.f32 %v49, %v68
    %v73 = vadd.f32 %v50, %v68
    %v74 = vadd.f32 %v51, %v68
    %v75 = vadd.f32 %v52, %v68
    %v76 = vadd.f32 %v53, %v68
    %v77 = vadd.f32 %v54, %v68
    %v78 = vadd.f32 %v55, %v68
    %v79 = vadd.f32 %v56, %v68
    %v80 = vadd.f32 %v57, %v68
    %v81 = vadd.f32 %v58, %v68
    %v82 = vadd.f32 %v59, %v68
    %v83 = vadd.f32 %v60, %v68
    %v84 = vadd.f32 %v61, %v68
    %v85 = vadd.f32 %v62, %v68
    %v86 = vld [vmem:[%s3] sm:$0xff]
    %v87 = vld [vmem:[%s3 + $0x8] sm:$0xff]
    %v88 = vld [vmem:[%s3 + $0x10] sm:$0xff]
    %v89 = vld [vmem:[%s3 + $0x18] sm:$0xff]
    %v90 = vld [vmem:[%s3 + $0x20] sm:$0xff]
    %v91 = vld [vmem:[%s3 + $0x28] sm:$0xff]
    %v92 = vld [vmem:[%s3 + $0x30] sm:$0xff]
    %v93 = vld [vmem:[%s3 + $0x38] sm:$0xff]
    %v94 = vld [vmem:[%s3 + $0x40] sm:$0xff]
    %v95 = vld [vmem:[%s3 + $0x48] sm:$0xff]
    %v96 = vld [vmem:[%s3 + $0x50] sm:$0xff]
    %v97 = vld [vmem:[%s3 + $0x58] sm:$0xff]
    %v98 = vld [vmem:[%s3 + $0x60] sm:$0xff]
    %v99 = vld [vmem:[%s3 + $0x68] sm:$0xff]
    %v100 = vld [vmem:[%s3 + $0x70] sm:$0xff]
    %v101 = vld [vmem:[%s3 + $0x78] sm:$0xff]
    %v102 = vld [vmem:[%s4] sm:$0x1]
    %v104 = vlaneseq
    %v105 = vshrl.u32 %v104, 7
    %v106 = vsub.s32 0, %v105
    %v107 = vrot.slane %v102, %v106
    %v109 = vmul.f32 %v86, %v107
    %v110 = vmul.f32 %v87, %v107
    %v111 = vmul.f32 %v88, %v107
    %v112 = vmul.f32 %v89, %v107
    %v113 = vmul.f32 %v90, %v107
    %v114 = vmul.f32 %v91, %v107
    %v115 = vmul.f32 %v92, %v107
    %v116 = vmul.f32 %v93, %v107
    %v117 = vmul.f32 %v94, %v107
    %v118 = vmul.f32 %v95, %v107
    %v119 = vmul.f32 %v96, %v107
    %v120 = vmul.f32 %v97, %v107
    %v121 = vmul.f32 %v98, %v107
    %v122 = vmul.f32 %v99, %v107
    %v123 = vmul.f32 %v100, %v107
    %v124 = vmul.f32 %v101, %v107
    %v125 = vld [vmem:[%s5] sm:$0x1]
    %v127 = vlaneseq
    %v128 = vshrl.u32 %v127, 7
    %v129 = vsub.s32 0, %v128
    %v130 = vrot.slane %v125, %v129
    %v132 = vadd.f32 %v109, %v130
    %v133 = vadd.f32 %v110, %v130
    %v134 = vadd.f32 %v111, %v130
    %v135 = vadd.f32 %v112, %v130
    %v136 = vadd.f32 %v113, %v130
    %v137 = vadd.f32 %v114, %v130
    %v138 = vadd.f32 %v115, %v130
    %v139 = vadd.f32 %v116, %v130
    %v140 = vadd.f32 %v117, %v130
    %v141 = vadd.f32 %v118, %v130
    %v142 = vadd.f32 %v119, %v130
    %v143 = vadd.f32 %v120, %v130
    %v144 = vadd.f32 %v121, %v130
    %v145 = vadd.f32 %v122, %v130
    %v146 = vadd.f32 %v123, %v130
    %v147 = vadd.f32 %v124, %v130
    %v148 = vadd.f32 %v70, %v132
    %v149 = vadd.f32 %v71, %v133
    %v150 = vadd.f32 %v72, %v134
    %v151 = vadd.f32 %v73, %v135
    %v152 = vadd.f32 %v74, %v136
    %v153 = vadd.f32 %v75, %v137
    %v154 = vadd.f32 %v76, %v138
    %v155 = vadd.f32 %v77, %v139
    %v156 = vadd.f32 %v78, %v140
    %v157 = vadd.f32 %v79, %v141
    %v158 = vadd.f32 %v80, %v142
    %v159 = vadd.f32 %v81, %v143
    %v160 = vadd.f32 %v82, %v144
    %v161 = vadd.f32 %v83, %v145
    %v162 = vadd.f32 %v84, %v146
    %v163 = vadd.f32 %v85, %v147
    %v164 = vmax.f32 %v148, 0.0
    %v165 = vmax.f32 %v149, 0.0
    %v166 = vmax.f32 %v150, 0.0
    %v167 = vmax.f32 %v151, 0.0
    %v168 = vmax.f32 %v152, 0.0
    %v169 = vmax.f32 %v153, 0.0
    %v170 = vmax.f32 %v154, 0.0
    %v171 = vmax.f32 %v155, 0.0
    %v172 = vmax.f32 %v156, 0.0
    %v173 = vmax.f32 %v157, 0.0
    %v174 = vmax.f32 %v158, 0.0
    %v175 = vmax.f32 %v159, 0.0
    %v176 = vmax.f32 %v160, 0.0
    %v177 = vmax.f32 %v161, 0.0
    %v178 = vmax.f32 %v162, 0.0
    %v179 = vmax.f32 %v163, 0.0
    %vm180 = vcmask 130048
    %181 = vst.msk [vmem:[#allocation2] sm:$0xff] %vm180, %v164
    %182 = vst.msk [vmem:[#allocation2 + $0x8] sm:$0xff] %vm180, %v165
    %183 = vst.msk [vmem:[#allocation2 + $0x10] sm:$0xff] %vm180, %v166
    %184 = vst.msk [vmem:[#allocation2 + $0x18] sm:$0xff] %vm180, %v167
    %185 = vst.msk [vmem:[#allocation2 + $0x20] sm:$0xff] %vm180, %v168
    %186 = vst.msk [vmem:[#allocation2 + $0x28] sm:$0xff] %vm180, %v169
    %187 = vst.msk [vmem:[#allocation2 + $0x30] sm:$0xff] %vm180, %v170
    %188 = vst.msk [vmem:[#allocation2 + $0x38] sm:$0xff] %vm180, %v171
    %189 = vst.msk [vmem:[#allocation2 + $0x40] sm:$0xff] %vm180, %v172
    %190 = vst.msk [vmem:[#allocation2 + $0x48] sm:$0xff] %vm180, %v173
    %191 = vst.msk [vmem:[#allocation2 + $0x50] sm:$0xff] %vm180, %v174
    %192 = vst.msk [vmem:[#allocation2 + $0x58] sm:$0xff] %vm180, %v175
    %193 = vst.msk [vmem:[#allocation2 + $0x60] sm:$0xff] %vm180, %v176
    %194 = vst.msk [vmem:[#allocation2 + $0x68] sm:$0xff] %vm180, %v177
    %195 = vst.msk [vmem:[#allocation2 + $0x70] sm:$0xff] %vm180, %v178
    %196 = vst.msk [vmem:[#allocation2 + $0x78] sm:$0xff] %vm180, %v179
    // Predicated region
    $region26: #{bottleneck_forward.11} parent=1 // pred_check
      _
    $region27: #{bottleneck_forward.11} parent=1 // pred_check_branch
      %198 = sbr.rel (0) target = $region29
    $region28: #{bottleneck_forward.11} parent=1 // pred_region
      %s200 = ssub.s32 2048, 2048
      %201 = vsyncadd [#allocation3], %s200
      %s202 = sshll.u32 [#allocation2], 4
      %s203 = int_to_ptr.vmem [resolvable:$true] %s202
      %208 = dma.vmem_to_hbm [thread:$0]  %s203, 2048, %s6, [#allocation3], 128, 128, 8
    $region29: #{bottleneck_forward.11} parent=1 // pred_fallthru
      _
    // Predicated region
    $region30: #{bottleneck_forward.11} parent=1 // pred_check
      _
    $region31: #{bottleneck_forward.11} parent=1 // pred_check_branch
      %210 = sbr.rel (0) target = $region33
    $region32: #{bottleneck_forward.11} parent=1 // pred_region
      %211 = dma.done [#allocation3], 2048
    $region33: #{bottleneck_forward.11} parent=1 // pred_fallthru
      _
    %212 = vsyncpa [#allocation3], 1

</llo_original>
